<compile_context>
chip_gen: v7x
topology: tpu7x:2x2x1
jax: 0.10.0
libtpu: 0.0.40
codegen_flags: <defaults>
</compile_context>

<pallas_src>
import functools

import jax
import jax.numpy as jnp
from jax import lax
from jax.experimental import pallas as pl
from jax.experimental.pallas import tpu as pltpu


def _conv3x3_taps(img, w_ref, b_ref, m_ref, W):
    """3x3 conv (cross-correlation, zero pad=1) on a channels-major flat image.

    img   : (Cin, L) value in the MXU dtype, L = H*W (lane axis, dense)
    w_ref : (9, Cout, Cin)   BN-scale-folded weights, tap-major (k=(kh)*3+kw)
    m_ref : (9, 1, L)        0/1 border-validity mask per tap
    b_ref : (Cout, 1) f32    BN bias
    returns (Cout, L) float32
    """
    _, L = img.shape
    acc = None
    k = 0
    for dh in (-1, 0, 1):
        for dw in (-1, 0, 1):
            off = dh * W + dw                       # flat-index tap offset
            shift = (-off) % L                      # jnp.roll convention
            shifted = img if shift == 0 else pltpu.roll(img, shift, axis=1)
            shifted = shifted * m_ref[k]            # zero taps falling off-image
            contrib = jnp.dot(w_ref[k], shifted,
                              preferred_element_type=jnp.float32)  # (Cout, L)
            acc = contrib if acc is None else acc + contrib
            k += 1
    return acc + b_ref[...]                         # BN bias (scale folded into w)


def basic_block_kernel(x_ref, w1_ref, b1_ref, w2_ref, b2_ref, m_ref, out_ref, *, W):
    """Fused conv3x3->bn->relu->conv3x3->bn->add->relu for one image.

    x_ref   : (1, Cin, L)    input image (also the skip connection), MXU dtype
    w1_ref  : (9, Cout, Cin) conv1 weights (BN1 scale folded in)
    b1_ref  : (Cout, 1)      BN1 bias (f32)
    w2_ref  : (9, Cout, Cout) conv2 weights (BN2 scale folded in)
    b2_ref  : (Cout, 1)      BN2 bias (f32)
    m_ref   : (9, 1, L)      per-tap border masks
    out_ref : (1, Cout, L)   output image (lane-dense stores)
    """
    # conv1 + bn1 + relu1  (x_ref read once here; image not kept live).
    y1 = jnp.maximum(_conv3x3_taps(x_ref[0], w1_ref, b1_ref, m_ref, W), 0.0)
    # conv2 + bn2 (feed MXU in compute dtype, keep f32 accumulation).
    y2 = _conv3x3_taps(y1.astype(x_ref.dtype), w2_ref, b2_ref, m_ref, W)
    # skip-add (identity re-read from x_ref, upcast to f32) + relu2.
    out = jnp.maximum(y2 + x_ref[0].astype(jnp.float32), 0.0)
    out_ref[0] = out.astype(out_ref.dtype)


def basic_block_forward(x_nchw, w1_oihw, gamma1, beta1, mean1, var1,
                        w2_oihw, gamma2, beta2, mean2, var2,
                        eps=1e-5, mxu_dtype=jnp.bfloat16):
    """NCHW in, NCHW out.  BN folding / layout glue (all free reshapes) in JAX."""
    N, Cin, H, W = x_nchw.shape
    Cout = w1_oihw.shape[0]
    assert Cin == Cout, "downsample=None BasicBlock requires inplanes == planes"
    L = H * W

    # Fold inference BatchNorm into conv weights + per-channel bias:
    #   bn(conv(x)) = conv(x) * s + b = conv_{w*s}(x) + b
    s1 = gamma1 / jnp.sqrt(var1 + eps)
    b1 = (beta1 - mean1 * s1).reshape(Cout, 1).astype(jnp.float32)
    s2 = gamma2 / jnp.sqrt(var2 + eps)
    b2 = (beta2 - mean2 * s2).reshape(Cout, 1).astype(jnp.float32)

    def fold(w_oihw, s):
        # (O,I,3,3) * s[o]  ->  tap-major (9, O, I)
        w = (w_oihw * s[:, None, None, None]).transpose(2, 3, 0, 1)
        return w.reshape(9, w_oihw.shape[0], w_oihw.shape[1]).astype(mxu_dtype)

    w1t = fold(w1_oihw, s1)                          # (9, Cout, Cin)
    w2t = fold(w2_oihw, s2)                          # (9, Cout, Cout)

    # 0/1 border-validity mask per tap, k = (dh+1)*3 + (dw+1)  (matches kernel).
    hh, ww = jnp.meshgrid(jnp.arange(H), jnp.arange(W), indexing="ij")
    masks = []
    for dh in (-1, 0, 1):
        for dw in (-1, 0, 1):
            valid = ((hh + dh >= 0) & (hh + dh < H) &
                     (ww + dw >= 0) & (ww + dw < W))
            masks.append(valid.reshape(L))
    tap_masks = jnp.stack(masks).reshape(9, 1, L).astype(mxu_dtype)

    # bf16 (mxu_dtype) HBM boundary; NCHW -> (N, C, H*W) is a free reshape.
    x_flat = x_nchw.reshape(N, Cin, L).astype(mxu_dtype)

    # VMEM budget: need + 50% headroom, capped at 48 MiB (v7x-safe), no floor.
    isz = jnp.dtype(mxu_dtype).itemsize
    block_bytes = (Cin + Cout) * L * isz                       # x tile + out tile
    const_bytes = (9 * Cout * (Cin + Cout) * isz + 2 * Cout * 4 + 9 * L * isz)
    temp_bytes = (Cin + Cout) * L * isz + 3 * Cout * L * 4     # rolled copies + f32 acc/y1/out
    need = 2 * 2 * block_bytes + 2 * const_bytes + temp_bytes
    vmem_limit = int(min(48 * 1024 * 1024, max(2 * 1024 * 1024, int(1.5 * need))))

    out_flat = pl.pallas_call(
        functools.partial(basic_block_kernel, W=W),
        out_shape=jax.ShapeDtypeStruct((N, Cout, L), mxu_dtype),
        grid=(N,),
        in_specs=[
            pl.BlockSpec((1, Cin, L), lambda n: (n, 0, 0)),       # x (+identity)
            pl.BlockSpec((9, Cout, Cin), lambda n: (0, 0, 0)),    # w1 (scale folded)
            pl.BlockSpec((Cout, 1), lambda n: (0, 0)),            # b1
            pl.BlockSpec((9, Cout, Cout), lambda n: (0, 0, 0)),   # w2 (scale folded)
            pl.BlockSpec((Cout, 1), lambda n: (0, 0)),            # b2
            pl.BlockSpec((9, 1, L), lambda n: (0, 0, 0)),         # per-tap border masks
        ],
        out_specs=pl.BlockSpec((1, Cout, L), lambda n: (n, 0, 0)),
        compiler_params=pltpu.CompilerParams(
            dimension_semantics=("parallel",),
            vmem_limit_bytes=vmem_limit,
        ),
    )(x_flat, w1t, b1, w2t, b2, tap_masks)

    return out_flat.reshape(N, Cout, H, W)           # free reshape back to NCHW


def reference_forward(x, w1_oihw, g1, be1, m1, v1, w2_oihw, g2, be2, m2, v2, eps):
    """Pure-JAX NCHW reference matching the PyTorch BasicBlock (eval mode)."""
    def bn(y, g, b, m, v):
        return (y - m[None, :, None, None]) * (
            g[None, :, None, None] / jnp.sqrt(v[None, :, None, None] + eps)
        ) + b[None, :, None, None]

    conv = lambda y, w: lax.conv_general_dilated(
        y, w, window_strides=(1, 1), padding=[(1, 1), (1, 1)],
        dimension_numbers=('NCHW', 'OIHW', 'NCHW'))

    out = jnp.maximum(bn(conv(x, w1_oihw), g1, be1, m1, v1), 0.0)
    out = bn(conv(out, w2_oihw), g2, be2, m2, v2)
    return jnp.maximum(out + x, 0.0)


if __name__ == "__main__":
    # Small synthetic config: inplanes == planes (downsample=None, stride=1).
    # H*W = 256 -> fully lane-dense activation slabs.
    N, C, H, W = 2, 8, 16, 16
    eps = 1e-5

    key = jax.random.PRNGKey(0)
    k_x, k_w1, k_w2 = jax.random.split(key, 3)

    x = jax.random.normal(k_x, (N, C, H, W), jnp.float32)          # NCHW, like PyTorch
    w1_oihw = 0.1 * jax.random.normal(k_w1, (C, C, 3, 3), jnp.float32)
    w2_oihw = 0.1 * jax.random.normal(k_w2, (C, C, 3, 3), jnp.float32)

    # Deterministic BatchNorm parameters / running stats (eval-mode semantics).
    gamma1 = 1.0 + 0.10 * jnp.arange(C, dtype=jnp.float32)
    beta1 = 0.05 * jnp.arange(C, dtype=jnp.float32)
    mean1 = 0.01 * jnp.arange(C, dtype=jnp.float32)
    var1 = 1.0 + 0.02 * jnp.arange(C, dtype=jnp.float32)
    gamma2 = 1.0 - 0.05 * jnp.arange(C, dtype=jnp.float32)
    beta2 = -0.03 * jnp.arange(C, dtype=jnp.float32)
    mean2 = -0.02 * jnp.arange(C, dtype=jnp.float32)
    var2 = 1.0 + 0.01 * jnp.arange(C, dtype=jnp.float32)

    ref = reference_forward(x, w1_oihw, gamma1, beta1, mean1, var1,
                            w2_oihw, gamma2, beta2, mean2, var2, eps)

    # Exact path: f32 activations / MXU operands -> matches reference tightly.
    out_f32 = basic_block_forward(x, w1_oihw, gamma1, beta1, mean1, var1,
                                  w2_oihw, gamma2, beta2, mean2, var2,
                                  eps=eps, mxu_dtype=jnp.float32)
    out_f32 = jax.block_until_ready(out_f32)
    assert out_f32.shape == (N, C, H, W)
    assert jnp.allclose(out_f32, ref, atol=1e-4, rtol=1e-4), "f32 kernel mismatch"

    # Fast path: bf16 HBM boundary + bf16 MXU operands, f32 accumulate /
    # element-wise inside the kernel.  Loose tolerance is expected (inference).
    out_bf16 = basic_block_forward(x, w1_oihw, gamma1, beta1, mean1, var1,
                                   w2_oihw, gamma2, beta2, mean2, var2,
                                   eps=eps, mxu_dtype=jnp.bfloat16)
    out_bf16 = jax.block_until_ready(out_bf16)
    assert out_bf16.shape == (N, C, H, W)
    assert jnp.allclose(out_bf16.astype(jnp.float32), ref,
                        atol=1e-1, rtol=5e-2), "bf16 kernel mismatch"

    print("KERNEL_OK")
</pallas_src>

<mosaic_0001>
module attributes {stable_mosaic.version = 11 : i64} {
  func.func @basic_block_kernel(%arg0: i32, %arg1: memref<1x8x256xf32, #tpu.memory_space<vmem>>, %arg2: memref<9x8x8xf32, #tpu.memory_space<vmem>>, %arg3: memref<8x1xf32, #tpu.memory_space<vmem>>, %arg4: memref<9x8x8xf32, #tpu.memory_space<vmem>>, %arg5: memref<8x1xf32, #tpu.memory_space<vmem>>, %arg6: memref<9x1x256xf32, #tpu.memory_space<vmem>>, %arg7: memref<1x8x256xf32, #tpu.memory_space<vmem>>) attributes {dimension_semantics = [#tpu.dimension_semantics<parallel>], iteration_bounds = array<i64: 2>, scalar_prefetch = 0 : i64, scratch_operands = 0 : i64, tpu.core_type = #tpu.core_type<tc>, window_params = [{transform_indices = @transform_0, window_bounds = array<i64: 1, 8, 256>}, {pipeline_mode = #tpu.pipeline_mode<synchronous>, transform_indices = @transform_1, window_bounds = array<i64: 9, 8, 8>}, {pipeline_mode = #tpu.pipeline_mode<synchronous>, transform_indices = @transform_2, window_bounds = array<i64: 8, 1>}, {pipeline_mode = #tpu.pipeline_mode<synchronous>, transform_indices = @transform_3, window_bounds = array<i64: 9, 8, 8>}, {pipeline_mode = #tpu.pipeline_mode<synchronous>, transform_indices = @transform_4, window_bounds = array<i64: 8, 1>}, {pipeline_mode = #tpu.pipeline_mode<synchronous>, transform_indices = @transform_5, window_bounds = array<i64: 9, 1, 256>}, {transform_indices = @transform_6, window_bounds = array<i64: 1, 8, 256>}]} {
    %c0 = arith.constant 0 : index
    %c0_0 = arith.constant 0 : index
    %c0_1 = arith.constant 0 : index
    %0 = vector.load %arg1[%c0, %c0_0, %c0_1] : memref<1x8x256xf32, #tpu.memory_space<vmem>>, vector<1x8x256xf32>
    %1 = vector.shape_cast %0 : vector<1x8x256xf32> to vector<8x256xf32>
    %c17_i32 = arith.constant 17 : i32
    %2 = tpu.dynamic_rotate %1 by %c17_i32 dim 1 : vector<8x256xf32>, i32 -> vector<8x256xf32>
    %c0_2 = arith.constant 0 : index
    %c0_3 = arith.constant 0 : index
    %c0_4 = arith.constant 0 : index
    %3 = vector.load %arg6[%c0_2, %c0_3, %c0_4] : memref<9x1x256xf32, #tpu.memory_space<vmem>>, vector<1x1x256xf32>
    %4 = vector.shape_cast %3 : vector<1x1x256xf32> to vector<1x256xf32>
    %5 = vector.broadcast %4 : vector<1x256xf32> to vector<8x256xf32>
    %6 = arith.mulf %2, %5 : vector<8x256xf32>
    %c0_5 = arith.constant 0 : index
    %c0_6 = arith.constant 0 : index
    %c0_7 = arith.constant 0 : index
    %7 = vector.load %arg2[%c0_5, %c0_6, %c0_7] : memref<9x8x8xf32, #tpu.memory_space<vmem>>, vector<1x8x8xf32>
    %8 = vector.shape_cast %7 : vector<1x8x8xf32> to vector<8x8xf32>
    %cst = arith.constant dense<0.000000e+00> : vector<8x256xf32>
    %9 = tpu.matmul %8, %6, %cst {dimension_numbers = #tpu.dot_dimension_numbers<[1], [0], [0], [1], [0, 0, 1, 1], [], []>} : vector<8x8xf32>, vector<8x256xf32>, vector<8x256xf32> -> vector<8x256xf32>
    %c16_i32 = arith.constant 16 : i32
    %10 = tpu.dynamic_rotate %1 by %c16_i32 dim 1 : vector<8x256xf32>, i32 -> vector<8x256xf32>
    %c1 = arith.constant 1 : index
    %c0_8 = arith.constant 0 : index
    %c0_9 = arith.constant 0 : index
    %11 = vector.load %arg6[%c1, %c0_8, %c0_9] : memref<9x1x256xf32, #tpu.memory_space<vmem>>, vector<1x1x256xf32>
    %12 = vector.shape_cast %11 : vector<1x1x256xf32> to vector<1x256xf32>
    %13 = vector.broadcast %12 : vector<1x256xf32> to vector<8x256xf32>
    %14 = arith.mulf %10, %13 : vector<8x256xf32>
    %c1_10 = arith.constant 1 : index
    %c0_11 = arith.constant 0 : index
    %c0_12 = arith.constant 0 : index
    %15 = vector.load %arg2[%c1_10, %c0_11, %c0_12] : memref<9x8x8xf32, #tpu.memory_space<vmem>>, vector<1x8x8xf32>
    %16 = vector.shape_cast %15 : vector<1x8x8xf32> to vector<8x8xf32>
    %cst_13 = arith.constant dense<0.000000e+00> : vector<8x256xf32>
    %17 = tpu.matmul %16, %14, %cst_13 {dimension_numbers = #tpu.dot_dimension_numbers<[1], [0], [0], [1], [0, 0, 1, 1], [], []>} : vector<8x8xf32>, vector<8x256xf32>, vector<8x256xf32> -> vector<8x256xf32>
    %18 = arith.addf %9, %17 : vector<8x256xf32>
    %c15_i32 = arith.constant 15 : i32
    %19 = tpu.dynamic_rotate %1 by %c15_i32 dim 1 : vector<8x256xf32>, i32 -> vector<8x256xf32>
    %c2 = arith.constant 2 : index
    %c0_14 = arith.constant 0 : index
    %c0_15 = arith.constant 0 : index
    %20 = vector.load %arg6[%c2, %c0_14, %c0_15] : memref<9x1x256xf32, #tpu.memory_space<vmem>>, vector<1x1x256xf32>
    %21 = vector.shape_cast %20 : vector<1x1x256xf32> to vector<1x256xf32>
    %22 = vector.broadcast %21 : vector<1x256xf32> to vector<8x256xf32>
    %23 = arith.mulf %19, %22 : vector<8x256xf32>
    %c2_16 = arith.constant 2 : index
    %c0_17 = arith.constant 0 : index
    %c0_18 = arith.constant 0 : index
    %24 = vector.load %arg2[%c2_16, %c0_17, %c0_18] : memref<9x8x8xf32, #tpu.memory_space<vmem>>, vector<1x8x8xf32>
    %25 = vector.shape_cast %24 : vector<1x8x8xf32> to vector<8x8xf32>
    %cst_19 = arith.constant dense<0.000000e+00> : vector<8x256xf32>
    %26 = tpu.matmul %25, %23, %cst_19 {dimension_numbers = #tpu.dot_dimension_numbers<[1], [0], [0], [1], [0, 0, 1, 1], [], []>} : vector<8x8xf32>, vector<8x256xf32>, vector<8x256xf32> -> vector<8x256xf32>
    %27 = arith.addf %18, %26 : vector<8x256xf32>
    %c1_i32 = arith.constant 1 : i32
    %28 = tpu.dynamic_rotate %1 by %c1_i32 dim 1 : vector<8x256xf32>, i32 -> vector<8x256xf32>
    %c3 = arith.constant 3 : index
    %c0_20 = arith.constant 0 : index
    %c0_21 = arith.constant 0 : index
    %29 = vector.load %arg6[%c3, %c0_20, %c0_21] : memref<9x1x256xf32, #tpu.memory_space<vmem>>, vector<1x1x256xf32>
    %30 = vector.shape_cast %29 : vector<1x1x256xf32> to vector<1x256xf32>
    %31 = vector.broadcast %30 : vector<1x256xf32> to vector<8x256xf32>
    %32 = arith.mulf %28, %31 : vector<8x256xf32>
    %c3_22 = arith.constant 3 : index
    %c0_23 = arith.constant 0 : index
    %c0_24 = arith.constant 0 : index
    %33 = vector.load %arg2[%c3_22, %c0_23, %c0_24] : memref<9x8x8xf32, #tpu.memory_space<vmem>>, vector<1x8x8xf32>
    %34 = vector.shape_cast %33 : vector<1x8x8xf32> to vector<8x8xf32>
    %cst_25 = arith.constant dense<0.000000e+00> : vector<8x256xf32>
    %35 = tpu.matmul %34, %32, %cst_25 {dimension_numbers = #tpu.dot_dimension_numbers<[1], [0], [0], [1], [0, 0, 1, 1], [], []>} : vector<8x8xf32>, vector<8x256xf32>, vector<8x256xf32> -> vector<8x256xf32>
    %36 = arith.addf %27, %35 : vector<8x256xf32>
    %c4 = arith.constant 4 : index
    %c0_26 = arith.constant 0 : index
    %c0_27 = arith.constant 0 : index
    %37 = vector.load %arg6[%c4, %c0_26, %c0_27] : memref<9x1x256xf32, #tpu.memory_space<vmem>>, vector<1x1x256xf32>
    %38 = vector.shape_cast %37 : vector<1x1x256xf32> to vector<1x256xf32>
    %39 = vector.broadcast %38 : vector<1x256xf32> to vector<8x256xf32>
    %40 = arith.mulf %1, %39 : vector<8x256xf32>
    %c4_28 = arith.constant 4 : index
    %c0_29 = arith.constant 0 : index
    %c0_30 = arith.constant 0 : index
    %41 = vector.load %arg2[%c4_28, %c0_29, %c0_30] : memref<9x8x8xf32, #tpu.memory_space<vmem>>, vector<1x8x8xf32>
    %42 = vector.shape_cast %41 : vector<1x8x8xf32> to vector<8x8xf32>
    %cst_31 = arith.constant dense<0.000000e+00> : vector<8x256xf32>
    %43 = tpu.matmul %42, %40, %cst_31 {dimension_numbers = #tpu.dot_dimension_numbers<[1], [0], [0], [1], [0, 0, 1, 1], [], []>} : vector<8x8xf32>, vector<8x256xf32>, vector<8x256xf32> -> vector<8x256xf32>
    %44 = arith.addf %36, %43 : vector<8x256xf32>
    %c255_i32 = arith.constant 255 : i32
    %45 = tpu.dynamic_rotate %1 by %c255_i32 dim 1 : vector<8x256xf32>, i32 -> vector<8x256xf32>
    %c5 = arith.constant 5 : index
    %c0_32 = arith.constant 0 : index
    %c0_33 = arith.constant 0 : index
    %46 = vector.load %arg6[%c5, %c0_32, %c0_33] : memref<9x1x256xf32, #tpu.memory_space<vmem>>, vector<1x1x256xf32>
    %47 = vector.shape_cast %46 : vector<1x1x256xf32> to vector<1x256xf32>
    %48 = vector.broadcast %47 : vector<1x256xf32> to vector<8x256xf32>
    %49 = arith.mulf %45, %48 : vector<8x256xf32>
    %c5_34 = arith.constant 5 : index
    %c0_35 = arith.constant 0 : index
    %c0_36 = arith.constant 0 : index
    %50 = vector.load %arg2[%c5_34, %c0_35, %c0_36] : memref<9x8x8xf32, #tpu.memory_space<vmem>>, vector<1x8x8xf32>
    %51 = vector.shape_cast %50 : vector<1x8x8xf32> to vector<8x8xf32>
    %cst_37 = arith.constant dense<0.000000e+00> : vector<8x256xf32>
    %52 = tpu.matmul %51, %49, %cst_37 {dimension_numbers = #tpu.dot_dimension_numbers<[1], [0], [0], [1], [0, 0, 1, 1], [], []>} : vector<8x8xf32>, vector<8x256xf32>, vector<8x256xf32> -> vector<8x256xf32>
    %53 = arith.addf %44, %52 : vector<8x256xf32>
    %c241_i32 = arith.constant 241 : i32
    %54 = tpu.dynamic_rotate %1 by %c241_i32 dim 1 : vector<8x256xf32>, i32 -> vector<8x256xf32>
    %c6 = arith.constant 6 : index
    %c0_38 = arith.constant 0 : index
    %c0_39 = arith.constant 0 : index
    %55 = vector.load %arg6[%c6, %c0_38, %c0_39] : memref<9x1x256xf32, #tpu.memory_space<vmem>>, vector<1x1x256xf32>
    %56 = vector.shape_cast %55 : vector<1x1x256xf32> to vector<1x256xf32>
    %57 = vector.broadcast %56 : vector<1x256xf32> to vector<8x256xf32>
    %58 = arith.mulf %54, %57 : vector<8x256xf32>
    %c6_40 = arith.constant 6 : index
    %c0_41 = arith.constant 0 : index
    %c0_42 = arith.constant 0 : index
    %59 = vector.load %arg2[%c6_40, %c0_41, %c0_42] : memref<9x8x8xf32, #tpu.memory_space<vmem>>, vector<1x8x8xf32>
    %60 = vector.shape_cast %59 : vector<1x8x8xf32> to vector<8x8xf32>
    %cst_43 = arith.constant dense<0.000000e+00> : vector<8x256xf32>
    %61 = tpu.matmul %60, %58, %cst_43 {dimension_numbers = #tpu.dot_dimension_numbers<[1], [0], [0], [1], [0, 0, 1, 1], [], []>} : vector<8x8xf32>, vector<8x256xf32>, vector<8x256xf32> -> vector<8x256xf32>
    %62 = arith.addf %53, %61 : vector<8x256xf32>
    %c240_i32 = arith.constant 240 : i32
    %63 = tpu.dynamic_rotate %1 by %c240_i32 dim 1 : vector<8x256xf32>, i32 -> vector<8x256xf32>
    %c7 = arith.constant 7 : index
    %c0_44 = arith.constant 0 : index
    %c0_45 = arith.constant 0 : index
    %64 = vector.load %arg6[%c7, %c0_44, %c0_45] : memref<9x1x256xf32, #tpu.memory_space<vmem>>, vector<1x1x256xf32>
    %65 = vector.shape_cast %64 : vector<1x1x256xf32> to vector<1x256xf32>
    %66 = vector.broadcast %65 : vector<1x256xf32> to vector<8x256xf32>
    %67 = arith.mulf %63, %66 : vector<8x256xf32>
    %c7_46 = arith.constant 7 : index
    %c0_47 = arith.constant 0 : index
    %c0_48 = arith.constant 0 : index
    %68 = vector.load %arg2[%c7_46, %c0_47, %c0_48] : memref<9x8x8xf32, #tpu.memory_space<vmem>>, vector<1x8x8xf32>
    %69 = vector.shape_cast %68 : vector<1x8x8xf32> to vector<8x8xf32>
    %cst_49 = arith.constant dense<0.000000e+00> : vector<8x256xf32>
    %70 = tpu.matmul %69, %67, %cst_49 {dimension_numbers = #tpu.dot_dimension_numbers<[1], [0], [0], [1], [0, 0, 1, 1], [], []>} : vector<8x8xf32>, vector<8x256xf32>, vector<8x256xf32> -> vector<8x256xf32>
    %71 = arith.addf %62, %70 : vector<8x256xf32>
    %c239_i32 = arith.constant 239 : i32
    %72 = tpu.dynamic_rotate %1 by %c239_i32 dim 1 : vector<8x256xf32>, i32 -> vector<8x256xf32>
    %c8 = arith.constant 8 : index
    %c0_50 = arith.constant 0 : index
    %c0_51 = arith.constant 0 : index
    %73 = vector.load %arg6[%c8, %c0_50, %c0_51] : memref<9x1x256xf32, #tpu.memory_space<vmem>>, vector<1x1x256xf32>
    %74 = vector.shape_cast %73 : vector<1x1x256xf32> to vector<1x256xf32>
    %75 = vector.broadcast %74 : vector<1x256xf32> to vector<8x256xf32>
    %76 = arith.mulf %72, %75 : vector<8x256xf32>
    %c8_52 = arith.constant 8 : index
    %c0_53 = arith.constant 0 : index
    %c0_54 = arith.constant 0 : index
    %77 = vector.load %arg2[%c8_52, %c0_53, %c0_54] : memref<9x8x8xf32, #tpu.memory_space<vmem>>, vector<1x8x8xf32>
    %78 = vector.shape_cast %77 : vector<1x8x8xf32> to vector<8x8xf32>
    %cst_55 = arith.constant dense<0.000000e+00> : vector<8x256xf32>
    %79 = tpu.matmul %78, %76, %cst_55 {dimension_numbers = #tpu.dot_dimension_numbers<[1], [0], [0], [1], [0, 0, 1, 1], [], []>} : vector<8x8xf32>, vector<8x256xf32>, vector<8x256xf32> -> vector<8x256xf32>
    %80 = arith.addf %71, %79 : vector<8x256xf32>
    %c0_56 = arith.constant 0 : index
    %c0_57 = arith.constant 0 : index
    %81 = vector.load %arg3[%c0_56, %c0_57] : memref<8x1xf32, #tpu.memory_space<vmem>>, vector<8x1xf32>
    %82 = vector.broadcast %81 : vector<8x1xf32> to vector<8x256xf32>
    %83 = arith.addf %80, %82 : vector<8x256xf32>
    %cst_58 = arith.constant 0.000000e+00 : f32
    %84 = vector.broadcast %cst_58 : f32 to vector<8x256xf32>
    %85 = arith.maximumf %83, %84 : vector<8x256xf32>
    %c17_i32_59 = arith.constant 17 : i32
    %86 = tpu.dynamic_rotate %85 by %c17_i32_59 dim 1 : vector<8x256xf32>, i32 -> vector<8x256xf32>
    %c0_60 = arith.constant 0 : index
    %c0_61 = arith.constant 0 : index
    %c0_62 = arith.constant 0 : index
    %87 = vector.load %arg6[%c0_60, %c0_61, %c0_62] : memref<9x1x256xf32, #tpu.memory_space<vmem>>, vector<1x1x256xf32>
    %88 = vector.shape_cast %87 : vector<1x1x256xf32> to vector<1x256xf32>
    %89 = vector.broadcast %88 : vector<1x256xf32> to vector<8x256xf32>
    %90 = arith.mulf %86, %89 : vector<8x256xf32>
    %c0_63 = arith.constant 0 : index
    %c0_64 = arith.constant 0 : index
    %c0_65 = arith.constant 0 : index
    %91 = vector.load %arg4[%c0_63, %c0_64, %c0_65] : memref<9x8x8xf32, #tpu.memory_space<vmem>>, vector<1x8x8xf32>
    %92 = vector.shape_cast %91 : vector<1x8x8xf32> to vector<8x8xf32>
    %cst_66 = arith.constant dense<0.000000e+00> : vector<8x256xf32>
    %93 = tpu.matmul %92, %90, %cst_66 {dimension_numbers = #tpu.dot_dimension_numbers<[1], [0], [0], [1], [0, 0, 1, 1], [], []>} : vector<8x8xf32>, vector<8x256xf32>, vector<8x256xf32> -> vector<8x256xf32>
    %c16_i32_67 = arith.constant 16 : i32
    %94 = tpu.dynamic_rotate %85 by %c16_i32_67 dim 1 : vector<8x256xf32>, i32 -> vector<8x256xf32>
    %c1_68 = arith.constant 1 : index
    %c0_69 = arith.constant 0 : index
    %c0_70 = arith.constant 0 : index
    %95 = vector.load %arg6[%c1_68, %c0_69, %c0_70] : memref<9x1x256xf32, #tpu.memory_space<vmem>>, vector<1x1x256xf32>
    %96 = vector.shape_cast %95 : vector<1x1x256xf32> to vector<1x256xf32>
    %97 = vector.broadcast %96 : vector<1x256xf32> to vector<8x256xf32>
    %98 = arith.mulf %94, %97 : vector<8x256xf32>
    %c1_71 = arith.constant 1 : index
    %c0_72 = arith.constant 0 : index
    %c0_73 = arith.constant 0 : index
    %99 = vector.load %arg4[%c1_71, %c0_72, %c0_73] : memref<9x8x8xf32, #tpu.memory_space<vmem>>, vector<1x8x8xf32>
    %100 = vector.shape_cast %99 : vector<1x8x8xf32> to vector<8x8xf32>
    %cst_74 = arith.constant dense<0.000000e+00> : vector<8x256xf32>
    %101 = tpu.matmul %100, %98, %cst_74 {dimension_numbers = #tpu.dot_dimension_numbers<[1], [0], [0], [1], [0, 0, 1, 1], [], []>} : vector<8x8xf32>, vector<8x256xf32>, vector<8x256xf32> -> vector<8x256xf32>
    %102 = arith.addf %93, %101 : vector<8x256xf32>
    %c15_i32_75 = arith.constant 15 : i32
    %103 = tpu.dynamic_rotate %85 by %c15_i32_75 dim 1 : vector<8x256xf32>, i32 -> vector<8x256xf32>
    %c2_76 = arith.constant 2 : index
    %c0_77 = arith.constant 0 : index
    %c0_78 = arith.constant 0 : index
    %104 = vector.load %arg6[%c2_76, %c0_77, %c0_78] : memref<9x1x256xf32, #tpu.memory_space<vmem>>, vector<1x1x256xf32>
    %105 = vector.shape_cast %104 : vector<1x1x256xf32> to vector<1x256xf32>
    %106 = vector.broadcast %105 : vector<1x256xf32> to vector<8x256xf32>
    %107 = arith.mulf %103, %106 : vector<8x256xf32>
    %c2_79 = arith.constant 2 : index
    %c0_80 = arith.constant 0 : index
    %c0_81 = arith.constant 0 : index
    %108 = vector.load %arg4[%c2_79, %c0_80, %c0_81] : memref<9x8x8xf32, #tpu.memory_space<vmem>>, vector<1x8x8xf32>
    %109 = vector.shape_cast %108 : vector<1x8x8xf32> to vector<8x8xf32>
    %cst_82 = arith.constant dense<0.000000e+00> : vector<8x256xf32>
    %110 = tpu.matmul %109, %107, %cst_82 {dimension_numbers = #tpu.dot_dimension_numbers<[1], [0], [0], [1], [0, 0, 1, 1], [], []>} : vector<8x8xf32>, vector<8x256xf32>, vector<8x256xf32> -> vector<8x256xf32>
    %111 = arith.addf %102, %110 : vector<8x256xf32>
    %c1_i32_83 = arith.constant 1 : i32
    %112 = tpu.dynamic_rotate %85 by %c1_i32_83 dim 1 : vector<8x256xf32>, i32 -> vector<8x256xf32>
    %c3_84 = arith.constant 3 : index
    %c0_85 = arith.constant 0 : index
    %c0_86 = arith.constant 0 : index
    %113 = vector.load %arg6[%c3_84, %c0_85, %c0_86] : memref<9x1x256xf32, #tpu.memory_space<vmem>>, vector<1x1x256xf32>
    %114 = vector.shape_cast %113 : vector<1x1x256xf32> to vector<1x256xf32>
    %115 = vector.broadcast %114 : vector<1x256xf32> to vector<8x256xf32>
    %116 = arith.mulf %112, %115 : vector<8x256xf32>
    %c3_87 = arith.constant 3 : index
    %c0_88 = arith.constant 0 : index
    %c0_89 = arith.constant 0 : index
    %117 = vector.load %arg4[%c3_87, %c0_88, %c0_89] : memref<9x8x8xf32, #tpu.memory_space<vmem>>, vector<1x8x8xf32>
    %118 = vector.shape_cast %117 : vector<1x8x8xf32> to vector<8x8xf32>
    %cst_90 = arith.constant dense<0.000000e+00> : vector<8x256xf32>
    %119 = tpu.matmul %118, %116, %cst_90 {dimension_numbers = #tpu.dot_dimension_numbers<[1], [0], [0], [1], [0, 0, 1, 1], [], []>} : vector<8x8xf32>, vector<8x256xf32>, vector<8x256xf32> -> vector<8x256xf32>
    %120 = arith.addf %111, %119 : vector<8x256xf32>
    %c4_91 = arith.constant 4 : index
    %c0_92 = arith.constant 0 : index
    %c0_93 = arith.constant 0 : index
    %121 = vector.load %arg6[%c4_91, %c0_92, %c0_93] : memref<9x1x256xf32, #tpu.memory_space<vmem>>, vector<1x1x256xf32>
    %122 = vector.shape_cast %121 : vector<1x1x256xf32> to vector<1x256xf32>
    %123 = vector.broadcast %122 : vector<1x256xf32> to vector<8x256xf32>
    %124 = arith.mulf %85, %123 : vector<8x256xf32>
    %c4_94 = arith.constant 4 : index
    %c0_95 = arith.constant 0 : index
    %c0_96 = arith.constant 0 : index
    %125 = vector.load %arg4[%c4_94, %c0_95, %c0_96] : memref<9x8x8xf32, #tpu.memory_space<vmem>>, vector<1x8x8xf32>
    %126 = vector.shape_cast %125 : vector<1x8x8xf32> to vector<8x8xf32>
    %cst_97 = arith.constant dense<0.000000e+00> : vector<8x256xf32>
    %127 = tpu.matmul %126, %124, %cst_97 {dimension_numbers = #tpu.dot_dimension_numbers<[1], [0], [0], [1], [0, 0, 1, 1], [], []>} : vector<8x8xf32>, vector<8x256xf32>, vector<8x256xf32> -> vector<8x256xf32>
    %128 = arith.addf %120, %127 : vector<8x256xf32>
    %c255_i32_98 = arith.constant 255 : i32
    %129 = tpu.dynamic_rotate %85 by %c255_i32_98 dim 1 : vector<8x256xf32>, i32 -> vector<8x256xf32>
    %c5_99 = arith.constant 5 : index
    %c0_100 = arith.constant 0 : index
    %c0_101 = arith.constant 0 : index
    %130 = vector.load %arg6[%c5_99, %c0_100, %c0_101] : memref<9x1x256xf32, #tpu.memory_space<vmem>>, vector<1x1x256xf32>
    %131 = vector.shape_cast %130 : vector<1x1x256xf32> to vector<1x256xf32>
    %132 = vector.broadcast %131 : vector<1x256xf32> to vector<8x256xf32>
    %133 = arith.mulf %129, %132 : vector<8x256xf32>
    %c5_102 = arith.constant 5 : index
    %c0_103 = arith.constant 0 : index
    %c0_104 = arith.constant 0 : index
    %134 = vector.load %arg4[%c5_102, %c0_103, %c0_104] : memref<9x8x8xf32, #tpu.memory_space<vmem>>, vector<1x8x8xf32>
    %135 = vector.shape_cast %134 : vector<1x8x8xf32> to vector<8x8xf32>
    %cst_105 = arith.constant dense<0.000000e+00> : vector<8x256xf32>
    %136 = tpu.matmul %135, %133, %cst_105 {dimension_numbers = #tpu.dot_dimension_numbers<[1], [0], [0], [1], [0, 0, 1, 1], [], []>} : vector<8x8xf32>, vector<8x256xf32>, vector<8x256xf32> -> vector<8x256xf32>
    %137 = arith.addf %128, %136 : vector<8x256xf32>
    %c241_i32_106 = arith.constant 241 : i32
    %138 = tpu.dynamic_rotate %85 by %c241_i32_106 dim 1 : vector<8x256xf32>, i32 -> vector<8x256xf32>
    %c6_107 = arith.constant 6 : index
    %c0_108 = arith.constant 0 : index
    %c0_109 = arith.constant 0 : index
    %139 = vector.load %arg6[%c6_107, %c0_108, %c0_109] : memref<9x1x256xf32, #tpu.memory_space<vmem>>, vector<1x1x256xf32>
    %140 = vector.shape_cast %139 : vector<1x1x256xf32> to vector<1x256xf32>
    %141 = vector.broadcast %140 : vector<1x256xf32> to vector<8x256xf32>
    %142 = arith.mulf %138, %141 : vector<8x256xf32>
    %c6_110 = arith.constant 6 : index
    %c0_111 = arith.constant 0 : index
    %c0_112 = arith.constant 0 : index
    %143 = vector.load %arg4[%c6_110, %c0_111, %c0_112] : memref<9x8x8xf32, #tpu.memory_space<vmem>>, vector<1x8x8xf32>
    %144 = vector.shape_cast %143 : vector<1x8x8xf32> to vector<8x8xf32>
    %cst_113 = arith.constant dense<0.000000e+00> : vector<8x256xf32>
    %145 = tpu.matmul %144, %142, %cst_113 {dimension_numbers = #tpu.dot_dimension_numbers<[1], [0], [0], [1], [0, 0, 1, 1], [], []>} : vector<8x8xf32>, vector<8x256xf32>, vector<8x256xf32> -> vector<8x256xf32>
    %146 = arith.addf %137, %145 : vector<8x256xf32>
    %c240_i32_114 = arith.constant 240 : i32
    %147 = tpu.dynamic_rotate %85 by %c240_i32_114 dim 1 : vector<8x256xf32>, i32 -> vector<8x256xf32>
    %c7_115 = arith.constant 7 : index
    %c0_116 = arith.constant 0 : index
    %c0_117 = arith.constant 0 : index
    %148 = vector.load %arg6[%c7_115, %c0_116, %c0_117] : memref<9x1x256xf32, #tpu.memory_space<vmem>>, vector<1x1x256xf32>
    %149 = vector.shape_cast %148 : vector<1x1x256xf32> to vector<1x256xf32>
    %150 = vector.broadcast %149 : vector<1x256xf32> to vector<8x256xf32>
    %151 = arith.mulf %147, %150 : vector<8x256xf32>
    %c7_118 = arith.constant 7 : index
    %c0_119 = arith.constant 0 : index
    %c0_120 = arith.constant 0 : index
    %152 = vector.load %arg4[%c7_118, %c0_119, %c0_120] : memref<9x8x8xf32, #tpu.memory_space<vmem>>, vector<1x8x8xf32>
    %153 = vector.shape_cast %152 : vector<1x8x8xf32> to vector<8x8xf32>
    %cst_121 = arith.constant dense<0.000000e+00> : vector<8x256xf32>
    %154 = tpu.matmul %153, %151, %cst_121 {dimension_numbers = #tpu.dot_dimension_numbers<[1], [0], [0], [1], [0, 0, 1, 1], [], []>} : vector<8x8xf32>, vector<8x256xf32>, vector<8x256xf32> -> vector<8x256xf32>
    %155 = arith.addf %146, %154 : vector<8x256xf32>
    %c239_i32_122 = arith.constant 239 : i32
    %156 = tpu.dynamic_rotate %85 by %c239_i32_122 dim 1 : vector<8x256xf32>, i32 -> vector<8x256xf32>
    %c8_123 = arith.constant 8 : index
    %c0_124 = arith.constant 0 : index
    %c0_125 = arith.constant 0 : index
    %157 = vector.load %arg6[%c8_123, %c0_124, %c0_125] : memref<9x1x256xf32, #tpu.memory_space<vmem>>, vector<1x1x256xf32>
    %158 = vector.shape_cast %157 : vector<1x1x256xf32> to vector<1x256xf32>
    %159 = vector.broadcast %158 : vector<1x256xf32> to vector<8x256xf32>
    %160 = arith.mulf %156, %159 : vector<8x256xf32>
    %c8_126 = arith.constant 8 : index
    %c0_127 = arith.constant 0 : index
    %c0_128 = arith.constant 0 : index
    %161 = vector.load %arg4[%c8_126, %c0_127, %c0_128] : memref<9x8x8xf32, #tpu.memory_space<vmem>>, vector<1x8x8xf32>
    %162 = vector.shape_cast %161 : vector<1x8x8xf32> to vector<8x8xf32>
    %cst_129 = arith.constant dense<0.000000e+00> : vector<8x256xf32>
    %163 = tpu.matmul %162, %160, %cst_129 {dimension_numbers = #tpu.dot_dimension_numbers<[1], [0], [0], [1], [0, 0, 1, 1], [], []>} : vector<8x8xf32>, vector<8x256xf32>, vector<8x256xf32> -> vector<8x256xf32>
    %164 = arith.addf %155, %163 : vector<8x256xf32>
    %c0_130 = arith.constant 0 : index
    %c0_131 = arith.constant 0 : index
    %165 = vector.load %arg5[%c0_130, %c0_131] : memref<8x1xf32, #tpu.memory_space<vmem>>, vector<8x1xf32>
    %166 = vector.broadcast %165 : vector<8x1xf32> to vector<8x256xf32>
    %167 = arith.addf %164, %166 : vector<8x256xf32>
    %c0_132 = arith.constant 0 : index
    %c0_133 = arith.constant 0 : index
    %c0_134 = arith.constant 0 : index
    %168 = vector.load %arg1[%c0_132, %c0_133, %c0_134] : memref<1x8x256xf32, #tpu.memory_space<vmem>>, vector<1x8x256xf32>
    %169 = vector.shape_cast %168 : vector<1x8x256xf32> to vector<8x256xf32>
    %170 = arith.addf %167, %169 : vector<8x256xf32>
    %cst_135 = arith.constant 0.000000e+00 : f32
    %171 = vector.broadcast %cst_135 : f32 to vector<8x256xf32>
    %172 = arith.maximumf %170, %171 : vector<8x256xf32>
    %c0_136 = arith.constant 0 : index
    %c0_137 = arith.constant 0 : index
    %c0_138 = arith.constant 0 : index
    %173 = vector.load %arg7[%c0_136, %c0_137, %c0_138] : memref<1x8x256xf32, #tpu.memory_space<vmem>>, vector<1x8x256xf32>
    %174 = vector.shape_cast %173 : vector<1x8x256xf32> to vector<8x256xf32>
    %175 = vector.shape_cast %172 : vector<8x256xf32> to vector<1x8x256xf32>
    tpu.vector_store %arg7[%c0_136, %c0_137, %c0_138], %175 {strides = array<i32>} : memref<1x8x256xf32, #tpu.memory_space<vmem>>, vector<1x8x256xf32>,
    return
  }
  func.func @transform_0(%arg0: i32) -> (i32, i32, i32) {
    %c0_i32 = arith.constant 0 : i32
    %c0_i32_0 = arith.constant 0 : i32
    %c0_i32_1 = arith.constant 0 : i32
    return %arg0, %c0_i32, %c0_i32_0 : i32, i32, i32
  }
  func.func @transform_1(%arg0: i32) -> (i32, i32, i32) {
    %c0_i32 = arith.constant 0 : i32
    %c0_i32_0 = arith.constant 0 : i32
    %c0_i32_1 = arith.constant 0 : i32
    %c0_i32_2 = arith.constant 0 : i32
    return %c0_i32, %c0_i32_0, %c0_i32_1 : i32, i32, i32
  }
  func.func @transform_2(%arg0: i32) -> (i32, i32) {
    %c0_i32 = arith.constant 0 : i32
    %c0_i32_0 = arith.constant 0 : i32
    %c0_i32_1 = arith.constant 0 : i32
    return %c0_i32, %c0_i32_0 : i32, i32
  }
  func.func @transform_3(%arg0: i32) -> (i32, i32, i32) {
    %c0_i32 = arith.constant 0 : i32
    %c0_i32_0 = arith.constant 0 : i32
    %c0_i32_1 = arith.constant 0 : i32
    %c0_i32_2 = arith.constant 0 : i32
    return %c0_i32, %c0_i32_0, %c0_i32_1 : i32, i32, i32
  }
  func.func @transform_4(%arg0: i32) -> (i32, i32) {
    %c0_i32 = arith.constant 0 : i32
    %c0_i32_0 = arith.constant 0 : i32
    %c0_i32_1 = arith.constant 0 : i32
    return %c0_i32, %c0_i32_0 : i32, i32
  }
  func.func @transform_5(%arg0: i32) -> (i32, i32, i32) {
    %c0_i32 = arith.constant 0 : i32
    %c0_i32_0 = arith.constant 0 : i32
    %c0_i32_1 = arith.constant 0 : i32
    %c0_i32_2 = arith.constant 0 : i32
    return %c0_i32, %c0_i32_0, %c0_i32_1 : i32, i32, i32
  }
  func.func @transform_6(%arg0: i32) -> (i32, i32, i32) {
    %c0_i32 = arith.constant 0 : i32
    %c0_i32_0 = arith.constant 0 : i32
    %c0_i32_1 = arith.constant 0 : i32
    return %arg0, %c0_i32, %c0_i32_0 : i32, i32, i32
  }
}

</mosaic_0001>

<llo_original>
// kernel: tpu_custom_call.1
$region0: #{tpu_custom_call.1}
  #allocation0 [shape = 'u32[]', space=smem, size = 0x4, offset = 0x4, fixed_abs, tag = 'smem constant byte address 0x4 - core index']
  #allocation1 [shape = 'u32[144,128]{1,0:T(1,128)}', space=vmem, size = 0x12000, scoped, tag = 'internal scratch']
  %s0 = inlined_call_operand.vmem [shape: f32[2,8,256], index: 0, kind: input, shape index: {}]
  %s1 = inlined_call_operand.vmem [shape: f32[9,8,8], index: 1, kind: input, shape index: {}]
  %s2 = inlined_call_operand.vmem [shape: f32[8,1], index: 2, kind: input, shape index: {}]
  %s3 = inlined_call_operand.vmem [shape: f32[9,8,8], index: 3, kind: input, shape index: {}]
  %s4 = inlined_call_operand.vmem [shape: f32[8,1], index: 4, kind: input, shape index: {}]
  %s5 = inlined_call_operand.vmem [shape: f32[9,1,256], index: 5, kind: input, shape index: {}]
  %s6 = inlined_call_operand.hbm [shape: f32[2,8,256], index: 6, kind: output, shape index: {}]
  %s7 = sld [smem:[#allocation0]]
  $region57: #{tpu_custom_call.1} parent=0
    _
  %s9 = ssub.s32 1, %s7
  %s10 = scalar_select 0, %s9, %s7
  $region1: #{tpu_custom_call.1} parent=0
    #allocation2 [shape = 'u8[16384]{0}', space=vmem, size = 0x4000, scoped, tag = 'output window, operand 0']
    #allocation3 [shape = 's32[2]{0}', space=sflag, size = 0x8, scoped, tag = 'scoped memory for tpu_custom_call.1']
    %11 = vsyncpa [#allocation3], 0
    %s12 = scalar_lea.sflag [#allocation3], 1
    %13 = vsyncpa %s12, 0
    loop: start=0, step=1, limit=4
    $region2: #{tpu_custom_call.1} parent=1 // loop_pre_header
      _
    $region3: #{tpu_custom_call.1} parent=1 // loop_header
      %s15 = sphi 0, %s19
      %p16 = scmp.ge.s32.totalorder %s15, 4
      %s25 = sphi 0, %s27
      %s28 = sphi 0, %s25
      %s29 = sphi 0, %s28
      %s45 = sphi 0, %s29
      %s49 = sphi 0, %s49
      %s51 = sphi 0, %s49
      %s52 = sphi 0, %s51
      %s66 = sphi 0, %s52
      %s70 = sphi 0, %s70
      %s72 = sphi 0, %s70
      %s73 = sphi 0, %s72
      %s87 = sphi 0, %s73
      %s91 = sphi 0, %s91
      %s93 = sphi 0, %s91
      %s94 = sphi 0, %s93
      %s108 = sphi 0, %s94
      %s112 = sphi 0, %s112
      %s114 = sphi 0, %s112
      %s115 = sphi 0, %s114
      %s129 = sphi 0, %s115
      %s133 = sphi 0, %s133
      %s135 = sphi 0, %s133
      %s136 = sphi 0, %s135
      %s150 = sphi 0, %s136
      %s156 = sphi 0, %s158
      %s159 = sphi 0, %s156
      %s160 = sphi 0, %s159
      %s176 = sphi 0, %s160
    $region4: #{tpu_custom_call.1} parent=1 // loop_header_branch
      %18 = sbr.rel (%p16) target = $region8
    $region5: #{tpu_custom_call.1} parent=1 // loop_body
      %s20 = ssub.s32 %s15, 1
      %s21 = ssub.s32 %s15, 2
      %s22 = sadd.s32 %s15, 1
      %s23 = ssub.s32 %s15, %s22
      %p24 = scmp.eq.s32.totalorder %s23, 0
      %s26 = sadd.s32 %s25, 1
      %s27 = scalar_select %p24, %s25, %s26
      %p30 = pneg %p24
      %p31 = scmp.eq.s32.totalorder %s15, 1
      %p32 = por %p30, %p31
      %p33 = scmp.ne.s32.totalorder %s25, %s28
      %p34 = scmp.eq.s32.totalorder %s15, 0
      %p35 = por %p33, %p34
      %p36 = scmp.ne.s32.totalorder %s25, %s28
      %p37 = scmp.eq.s32.totalorder %s20, 1
      %p38 = por %p36, %p37
      %p39 = scmp.ne.s32.totalorder %s28, %s29
      %p40 = scmp.eq.s32.totalorder %s20, 0
      %p41 = por %p39, %p40
      %p42 = scmp.ne.s32.totalorder %s28, %s29
      %p43 = scmp.eq.s32.totalorder %s21, 1
      %p44 = por %p42, %p43
      %p46 = scmp.ne.s32.totalorder %s29, %s45
      %p47 = scmp.eq.s32.totalorder %s21, 0
      %p48 = por %p46, %p47
      %s50 = sadd.s32 %s49, 1
      %p53 = scmp.eq.s32.totalorder %s15, 1
      %p54 = scmp.ne.s32.totalorder %s49, %s51
      %p55 = scmp.eq.s32.totalorder %s15, 0
      %p56 = por %p54, %p55
      %p57 = scmp.ne.s32.totalorder %s49, %s51
      %p58 = scmp.eq.s32.totalorder %s20, 1
      %p59 = por %p57, %p58
      %p60 = scmp.ne.s32.totalorder %s51, %s52
      %p61 = scmp.eq.s32.totalorder %s20, 0
      %p62 = por %p60, %p61
      %p63 = scmp.ne.s32.totalorder %s51, %s52
      %p64 = scmp.eq.s32.totalorder %s21, 1
      %p65 = por %p63, %p64
      %p67 = scmp.ne.s32.totalorder %s52, %s66
      %p68 = scmp.eq.s32.totalorder %s21, 0
      %p69 = por %p67, %p68
      %s71 = sadd.s32 %s70, 1
      %p74 = scmp.eq.s32.totalorder %s15, 1
      %p75 = scmp.ne.s32.totalorder %s70, %s72
      %p76 = scmp.eq.s32.totalorder %s15, 0
      %p77 = por %p75, %p76
      %p78 = scmp.ne.s32.totalorder %s70, %s72
      %p79 = scmp.eq.s32.totalorder %s20, 1
      %p80 = por %p78, %p79
      %p81 = scmp.ne.s32.totalorder %s72, %s73
      %p82 = scmp.eq.s32.totalorder %s20, 0
      %p83 = por %p81, %p82
      %p84 = scmp.ne.s32.totalorder %s72, %s73
      %p85 = scmp.eq.s32.totalorder %s21, 1
      %p86 = por %p84, %p85
      %p88 = scmp.ne.s32.totalorder %s73, %s87
      %p89 = scmp.eq.s32.totalorder %s21, 0
      %p90 = por %p88, %p89
      %s92 = sadd.s32 %s91, 1
      %p95 = scmp.eq.s32.totalorder %s15, 1
      %p96 = scmp.ne.s32.totalorder %s91, %s93
      %p97 = scmp.eq.s32.totalorder %s15, 0
      %p98 = por %p96, %p97
      %p99 = scmp.ne.s32.totalorder %s91, %s93
      %p100 = scmp.eq.s32.totalorder %s20, 1
      %p101 = por %p99, %p100
      %p102 = scmp.ne.s32.totalorder %s93, %s94
      %p103 = scmp.eq.s32.totalorder %s20, 0
      %p104 = por %p102, %p103
      %p105 = scmp.ne.s32.totalorder %s93, %s94
      %p106 = scmp.eq.s32.totalorder %s21, 1
      %p107 = por %p105, %p106
      %p109 = scmp.ne.s32.totalorder %s94, %s108
      %p110 = scmp.eq.s32.totalorder %s21, 0
      %p111 = por %p109, %p110
      %s113 = sadd.s32 %s112, 1
      %p116 = scmp.eq.s32.totalorder %s15, 1
      %p117 = scmp.ne.s32.totalorder %s112, %s114
      %p118 = scmp.eq.s32.totalorder %s15, 0
      %p119 = por %p117, %p118
      %p120 = scmp.ne.s32.totalorder %s112, %s114
      %p121 = scmp.eq.s32.totalorder %s20, 1
      %p122 = por %p120, %p121
      %p123 = scmp.ne.s32.totalorder %s114, %s115
      %p124 = scmp.eq.s32.totalorder %s20, 0
      %p125 = por %p123, %p124
      %p126 = scmp.ne.s32.totalorder %s114, %s115
      %p127 = scmp.eq.s32.totalorder %s21, 1
      %p128 = por %p126, %p127
      %p130 = scmp.ne.s32.totalorder %s115, %s129
      %p131 = scmp.eq.s32.totalorder %s21, 0
      %p132 = por %p130, %p131
      %s134 = sadd.s32 %s133, 1
      %p137 = scmp.eq.s32.totalorder %s15, 1
      %p138 = scmp.ne.s32.totalorder %s133, %s135
      %p139 = scmp.eq.s32.totalorder %s15, 0
      %p140 = por %p138, %p139
      %p141 = scmp.ne.s32.totalorder %s133, %s135
      %p142 = scmp.eq.s32.totalorder %s20, 1
      %p143 = por %p141, %p142
      %p144 = scmp.ne.s32.totalorder %s135, %s136
      %p145 = scmp.eq.s32.totalorder %s20, 0
      %p146 = por %p144, %p145
      %p147 = scmp.ne.s32.totalorder %s135, %s136
      %p148 = scmp.eq.s32.totalorder %s21, 1
      %p149 = por %p147, %p148
      %p151 = scmp.ne.s32.totalorder %s136, %s150
      %p152 = scmp.eq.s32.totalorder %s21, 0
      %p153 = por %p151, %p152
      %s154 = ssub.s32 %s15, %s22
      %p155 = scmp.eq.s32.totalorder %s154, 0
      %s157 = sadd.s32 %s156, 1
      %s158 = scalar_select %p155, %s156, %s157
      %p161 = pneg %p155
      %p162 = scmp.eq.s32.totalorder %s15, 1
      %p163 = por %p161, %p162
      %p164 = scmp.ne.s32.totalorder %s156, %s159
      %p165 = scmp.eq.s32.totalorder %s15, 0
      %p166 = por %p164, %p165
      %p167 = scmp.ne.s32.totalorder %s156, %s159
      %p168 = scmp.eq.s32.totalorder %s20, 1
      %p169 = por %p167, %p168
      %p170 = scmp.ne.s32.totalorder %s159, %s160
      %p171 = scmp.eq.s32.totalorder %s20, 0
      %p172 = por %p170, %p171
      %p173 = scmp.ne.s32.totalorder %s159, %s160
      %p174 = scmp.eq.s32.totalorder %s21, 1
      %p175 = por %p173, %p174
      %p177 = scmp.ne.s32.totalorder %s160, %s176
      %p178 = scmp.eq.s32.totalorder %s21, 0
      %p179 = por %p177, %p178
      %p180 = scmp.le.s32.totalorder 1, %s15
      %p181 = scmp.lt.s32.totalorder %s15, 3
      %p182 = pnand %p180, %p181
      %p183 = pneg %p182
      // Predicated region
      $region9: #{tpu_custom_call.1} parent=5 // pred_check
        _
      $region10: #{tpu_custom_call.1} parent=5 // pred_check_branch
        %185 = sbr.rel (%p182) target = $region12
      $region11: #{tpu_custom_call.1} parent=5 // pred_region
        %s186 = ssub.s32 %s15, 1
        // Predicated region
        $region13: #{tpu_custom_call.1} parent=11 // pred_check
          %p187 = pneg %p62
        $region14: #{tpu_custom_call.1} parent=11 // pred_check_branch
          %189 = sbr.rel (%p187) target = $region16
        $region15: #{tpu_custom_call.1} parent=11 // pred_region
          _
        $region16: #{tpu_custom_call.1} parent=11 // pred_fallthru
          _
        // Predicated region
        $region17: #{tpu_custom_call.1} parent=11 // pred_check
          %p190 = pneg %p83
        $region18: #{tpu_custom_call.1} parent=11 // pred_check_branch
          %192 = sbr.rel (%p190) target = $region20
        $region19: #{tpu_custom_call.1} parent=11 // pred_region
          _
        $region20: #{tpu_custom_call.1} parent=11 // pred_fallthru
          _
        // Predicated region
        $region21: #{tpu_custom_call.1} parent=11 // pred_check
          %p193 = pneg %p104
        $region22: #{tpu_custom_call.1} parent=11 // pred_check_branch
          %195 = sbr.rel (%p193) target = $region24
        $region23: #{tpu_custom_call.1} parent=11 // pred_region
          _
        $region24: #{tpu_custom_call.1} parent=11 // pred_fallthru
          _
        // Predicated region
        $region25: #{tpu_custom_call.1} parent=11 // pred_check
          %p196 = pneg %p125
        $region26: #{tpu_custom_call.1} parent=11 // pred_check_branch
          %198 = sbr.rel (%p196) target = $region28
        $region27: #{tpu_custom_call.1} parent=11 // pred_region
          _
        $region28: #{tpu_custom_call.1} parent=11 // pred_fallthru
          _
        // Predicated region
        $region29: #{tpu_custom_call.1} parent=11 // pred_check
          %p199 = pneg %p146
        $region30: #{tpu_custom_call.1} parent=11 // pred_check_branch
          %201 = sbr.rel (%p199) target = $region32
        $region31: #{tpu_custom_call.1} parent=11 // pred_region
          _
        $region32: #{tpu_custom_call.1} parent=11 // pred_fallthru
          _
      $region12: #{tpu_custom_call.1} parent=5 // pred_fallthru
        _
      %p202 = scmp.lt.s32.totalorder %s15, 2
      // Predicated region
      $region33: #{tpu_custom_call.1} parent=5 // pred_check
        %p203 = pneg %p202
      $region34: #{tpu_custom_call.1} parent=5 // pred_check_branch
        %205 = sbr.rel (%p203) target = $region36
      $region35: #{tpu_custom_call.1} parent=5 // pred_region
        // Predicated region
        $region37: #{tpu_custom_call.1} parent=35 // pred_check
          %p206 = pneg %p35
        $region38: #{tpu_custom_call.1} parent=35 // pred_check_branch
          %208 = sbr.rel (%p206) target = $region40
        $region39: #{tpu_custom_call.1} parent=35 // pred_region
          %p209 = scmp.lt.s32.totalorder %s15, 1
          %s210 = scalar_select %p209, %s15, 1
          %s211 = smul.addr %s210, 2
          %s212 = smul.addr %s211, 8
          %s213 = scalar_lea.vmem %s0, %s212
        $region40: #{tpu_custom_call.1} parent=35 // pred_fallthru
          _
      $region36: #{tpu_custom_call.1} parent=5 // pred_fallthru
        _
      %p214 = scmp.le.s32.totalorder 1, %s15
      %p215 = scmp.lt.s32.totalorder %s15, 3
      %p216 = pnand %p214, %p215
      %p217 = pneg %p216
      // Predicated region
      $region41: #{tpu_custom_call.1} parent=5 // pred_check
        _
      $region42: #{tpu_custom_call.1} parent=5 // pred_check_branch
        %219 = sbr.rel (%p216) target = $region44
      $region43: #{tpu_custom_call.1} parent=5 // pred_region
        %s220 = ssub.s32 %s15, 1
        %p221 = scmp.lt.s32.totalorder %s20, 1
        %s222 = scalar_select %p221, %s20, 1
        %s223 = smul.addr %s222, 2
        %s224 = smul.addr %s223, 8
        %s225 = scalar_lea.vmem %s0, %s224
        %p226 = pneg %p41
        %p227 = pneg %p38
        %p228 = pneg %p62
        %p229 = pneg %p59
        %p230 = pneg %p83
        %p231 = pneg %p80
        %p232 = pneg %p104
        %p233 = pneg %p101
        %p234 = pneg %p125
        %p235 = pneg %p122
        %p236 = pneg %p146
        %p237 = pneg %p143
        %p238 = pneg %p172
        %p239 = pneg %p169
        %s240 = sand.u32 %s159, 1
        %s241 = scalar_lea.sflag [#allocation3], %s240
        %s242 = sand.u32 %s159, 1
        %s243 = smul.addr %s242, 16
        %s244 = scalar_lea.vmem [#allocation2], %s243
        %p245 = scmp.lt.s32.totalorder %s20, 1
        %s246 = scalar_select %p245, %s20, 1
        %s247 = smul.addr %s246, 2
        %s248 = smul.addr %s247, 8
        %s249 = scalar_lea.vmem %s0, %s248
        %v250 = vld [vmem:[%s249] sm:$0xff]
        %v251 = vld [vmem:[%s249 + $0x8] sm:$0xff]
        %252 = vrot.lane.b32.xlu0 %v250, 17
        %v253 = vpop.permute.xlu0 %252
        %254 = vrot.lane.b32.xlu0 %v251, 17
        %v255 = vpop.permute.xlu0 %254
        %v256 = vlaneseq
        %v257 = vand.u32 %v256, 127
        %vm258 = vcmp.lt.s32.totalorder %v257, 17
        %v259 = vsel %vm258, %v253, %v255
        %v260 = vsel %vm258, %v255, %v253
        %v261 = vld [vmem:[%s5] sm:$0x3]
        %v263 = vlaneseq
        %v264 = vshrl.u32 %v263, 7
        %v265 = vsub.s32 0, %v264
        %v266 = vrot.slane %v261, %v265
        %v267 = vlaneseq
        %v268 = vshrl.u32 %v267, 7
        %v269 = vsub.s32 1, %v268
        %v270 = vrot.slane %v261, %v269
        %v273 = vmul.f32 %v260, %v266
        %v274 = vmul.f32 %v259, %v270
        %v275 = vld [vmem:[%s1] sm:$0xff]
        %276 = vrot.lane.b32.xlu0 %v250, 16
        %v277 = vpop.permute.xlu0 %276
        %278 = vrot.lane.b32.xlu0 %v251, 16
        %v279 = vpop.permute.xlu0 %278
        %vm280 = vcmp.lt.s32.totalorder %v257, 16
        %v281 = vsel %vm280, %v277, %v279
        %v282 = vsel %vm280, %v279, %v277
        %s283 = scalar_lea.vmem %s5, 2
        %v284 = vld [vmem:[%s283] sm:$0x3]
        %v286 = vlaneseq
        %v287 = vshrl.u32 %v286, 7
        %v288 = vsub.s32 0, %v287
        %v289 = vrot.slane %v284, %v288
        %v290 = vlaneseq
        %v291 = vshrl.u32 %v290, 7
        %v292 = vsub.s32 1, %v291
        %v293 = vrot.slane %v284, %v292
        %v296 = vmul.f32 %v282, %v289
        %v297 = vmul.f32 %v281, %v293
        %s298 = scalar_lea.vmem %s1, 8
        %v299 = vld [vmem:[%s298] sm:$0xff]
        %vm300 = vcmask 64512
        %v302 = vsel %vm300, %v299, 0
        %304 = vmatprep.subr.mxu0 %v297
        %305 = vmatpush1.msra.mxu0 %v296
        %306 = vmatprep.subr.mxu0 0.0
        %307 = vmatpush1.msra.mxu0 0.0
        %308 = vmatprep.subr.mxu0 0.0
        %309 = vmatpush1.msra.mxu0 0.0
        %310 = vmatprep.subr.mxu0 0.0
        %311 = vmatpush1.msra.mxu0 0.0
        %312 = vmatprep.subr.mxu0 0.0
        %313 = vmatpush1.msra.mxu0 0.0
        %314 = vmatprep.subr.mxu0 0.0
        %315 = vmatpush1.msra.mxu0 0.0
        %316 = vmatprep.subr.mxu0 0.0
        %317 = vmatpush1.msra.mxu0 0.0
        %318 = vmatprep.subr.mxu0 0.0
        %319 = vmatpush1.msra.mxu0 0.0
        %320 = vmatprep.subr.mxu0 0.0
        %321 = vmatpush1.msra.mxu0 0.0
        %322 = vmatprep.subr.mxu0 0.0
        %323 = vmatpush1.msra.mxu0 0.0
        %324 = vmatprep.subr.mxu0 0.0
        %325 = vmatpush1.msra.mxu0 0.0
        %326 = vmatprep.subr.mxu0 0.0
        %327 = vmatpush1.msra.mxu0 0.0
        %328 = vmatprep.subr.mxu0 0.0
        %329 = vmatpush1.msra.mxu0 0.0
        %330 = vmatprep.subr.mxu0 0.0
        %331 = vmatpush1.msra.mxu0 0.0
        %332 = vmatprep.subr.mxu0 0.0
        %333 = vmatpush1.msra.mxu0 0.0
        %334 = vmatprep.subr.mxu0 0.0
        %335 = vmatpush1.msra.mxu0 0.0
        %336 = vmatprep.subr.mxu0 0.0
        %337 = vmatpush1.msra.mxu0 0.0
        %338 = vmatprep.subr.mxu0 0.0
        %339 = vmatpush1.msra.mxu0 0.0
        %340 = vmatprep.subr.mxu0 0.0
        %341 = vmatpush1.msra.mxu0 0.0
        %342 = vmatprep.subr.mxu0 0.0
        %343 = vmatpush1.msra.mxu0 0.0
        %344 = vmatprep.subr.mxu0 0.0
        %345 = vmatpush1.msra.mxu0 0.0
        %346 = vmatprep.subr.mxu0 0.0
        %347 = vmatpush1.msra.mxu0 0.0
        %348 = vmatprep.subr.mxu0 0.0
        %349 = vmatpush1.msra.mxu0 0.0
        %350 = vmatprep.subr.mxu0 0.0
        %351 = vmatpush1.msra.mxu0 0.0
        %352 = vmatprep.subr.mxu0 0.0
        %353 = vmatpush1.msra.mxu0 0.0
        %354 = vmatprep.subr.mxu0 0.0
        %355 = vmatpush1.msra.mxu0 0.0
        %356 = vmatprep.subr.mxu0 0.0
        %357 = vmatpush1.msra.mxu0 0.0
        %358 = vmatprep.subr.mxu0 0.0
        %359 = vmatpush1.msra.mxu0 0.0
        %360 = vmatprep.subr.mxu0 0.0
        %361 = vmatpush1.msra.mxu0 0.0
        %362 = vmatprep.subr.mxu0 0.0
        %363 = vmatpush1.msra.mxu0 0.0
        %364 = vmatprep.subr.mxu0 0.0
        %365 = vmatpush1.msra.mxu0 0.0
        %366 = vmatprep.subr.mxu0 0.0
        %367 = vmatpush1.msra.mxu0 0.0
        %368 = vmatprep.mubr.f32.mxu0 0.0
        %369 = vmatmul.mubr.f32.gmra.mrb[0].mxu0 %v302
        %v370 = vpop.f32.mrb[0].mxu0
        %v371 = vadd.f32 0.0, %v370
        %v372 = vpop.f32.mrb[0].mxu0
        %v373 = vadd.f32 0.0, %v372
        %374 = vdwg.mxu0
        %v376 = vsel %vm300, %v275, 0
        %378 = vmatprep.subr.mxu0 %v274
        %379 = vmatpush1.msra.mxu0 %v273
        %380 = vmatprep.subr.mxu0 0.0
        %381 = vmatpush1.msra.mxu0 0.0
        %382 = vmatprep.subr.mxu0 0.0
        %383 = vmatpush1.msra.mxu0 0.0
        %384 = vmatprep.subr.mxu0 0.0
        %385 = vmatpush1.msra.mxu0 0.0
        %386 = vmatprep.subr.mxu0 0.0
        %387 = vmatpush1.msra.mxu0 0.0
        %388 = vmatprep.subr.mxu0 0.0
        %389 = vmatpush1.msra.mxu0 0.0
        %390 = vmatprep.subr.mxu0 0.0
        %391 = vmatpush1.msra.mxu0 0.0
        %392 = vmatprep.subr.mxu0 0.0
        %393 = vmatpush1.msra.mxu0 0.0
        %394 = vmatprep.subr.mxu0 0.0
        %395 = vmatpush1.msra.mxu0 0.0
        %396 = vmatprep.subr.mxu0 0.0
        %397 = vmatpush1.msra.mxu0 0.0
        %398 = vmatprep.subr.mxu0 0.0
        %399 = vmatpush1.msra.mxu0 0.0
        %400 = vmatprep.subr.mxu0 0.0
        %401 = vmatpush1.msra.mxu0 0.0
        %402 = vmatprep.subr.mxu0 0.0
        %403 = vmatpush1.msra.mxu0 0.0
        %404 = vmatprep.subr.mxu0 0.0
        %405 = vmatpush1.msra.mxu0 0.0
        %406 = vmatprep.subr.mxu0 0.0
        %407 = vmatpush1.msra.mxu0 0.0
        %408 = vmatprep.subr.mxu0 0.0
        %409 = vmatpush1.msra.mxu0 0.0
        %410 = vmatprep.subr.mxu0 0.0
        %411 = vmatpush1.msra.mxu0 0.0
        %412 = vmatprep.subr.mxu0 0.0
        %413 = vmatpush1.msra.mxu0 0.0
        %414 = vmatprep.subr.mxu0 0.0
        %415 = vmatpush1.msra.mxu0 0.0
        %416 = vmatprep.subr.mxu0 0.0
        %417 = vmatpush1.msra.mxu0 0.0
        %418 = vmatprep.subr.mxu0 0.0
        %419 = vmatpush1.msra.mxu0 0.0
        %420 = vmatprep.subr.mxu0 0.0
        %421 = vmatpush1.msra.mxu0 0.0
        %422 = vmatprep.subr.mxu0 0.0
        %423 = vmatpush1.msra.mxu0 0.0
        %424 = vmatprep.subr.mxu0 0.0
        %425 = vmatpush1.msra.mxu0 0.0
        %426 = vmatprep.subr.mxu0 0.0
        %427 = vmatpush1.msra.mxu0 0.0
        %428 = vmatprep.subr.mxu0 0.0
        %429 = vmatpush1.msra.mxu0 0.0
        %430 = vmatprep.subr.mxu0 0.0
        %431 = vmatpush1.msra.mxu0 0.0
        %432 = vmatprep.subr.mxu0 0.0
        %433 = vmatpush1.msra.mxu0 0.0
        %434 = vmatprep.subr.mxu0 0.0
        %435 = vmatpush1.msra.mxu0 0.0
        %436 = vmatprep.subr.mxu0 0.0
        %437 = vmatpush1.msra.mxu0 0.0
        %438 = vmatprep.subr.mxu0 0.0
        %439 = vmatpush1.msra.mxu0 0.0
        %440 = vmatprep.subr.mxu0 0.0
        %441 = vmatpush1.msra.mxu0 0.0
        %442 = vmatprep.mubr.f32.mxu0 0.0
        %443 = vmatmul.mubr.f32.gmra.mrb[0].mxu0 %v376
        %v444 = vpop.f32.mrb[0].mxu0
        %v445 = vadd.f32 %v371, %v444
        %v446 = vpop.f32.mrb[0].mxu0
        %v447 = vadd.f32 %v373, %v446
        %448 = vdwg.mxu0
        %449 = vrot.lane.b32.xlu0 %v250, 15
        %v450 = vpop.permute.xlu0 %449
        %451 = vrot.lane.b32.xlu0 %v251, 15
        %v452 = vpop.permute.xlu0 %451
        %vm453 = vcmp.lt.s32.totalorder %v257, 15
        %v454 = vsel %vm453, %v450, %v452
        %v455 = vsel %vm453, %v452, %v450
        %s456 = scalar_lea.vmem %s5, 4
        %v457 = vld [vmem:[%s456] sm:$0x3]
        %v459 = vlaneseq
        %v460 = vshrl.u32 %v459, 7
        %v461 = vsub.s32 0, %v460
        %v462 = vrot.slane %v457, %v461
        %v463 = vlaneseq
        %v464 = vshrl.u32 %v463, 7
        %v465 = vsub.s32 1, %v464
        %v466 = vrot.slane %v457, %v465
        %v469 = vmul.f32 %v455, %v462
        %v470 = vmul.f32 %v454, %v466
        %s471 = scalar_lea.vmem %s1, 16
        %v472 = vld [vmem:[%s471] sm:$0xff]
        %v474 = vsel %vm300, %v472, 0
        %476 = vmatprep.subr.mxu0 %v470
        %477 = vmatpush1.msra.mxu0 %v469
        %478 = vmatprep.subr.mxu0 0.0
        %479 = vmatpush1.msra.mxu0 0.0
        %480 = vmatprep.subr.mxu0 0.0
        %481 = vmatpush1.msra.mxu0 0.0
        %482 = vmatprep.subr.mxu0 0.0
        %483 = vmatpush1.msra.mxu0 0.0
        %484 = vmatprep.subr.mxu0 0.0
        %485 = vmatpush1.msra.mxu0 0.0
        %486 = vmatprep.subr.mxu0 0.0
        %487 = vmatpush1.msra.mxu0 0.0
        %488 = vmatprep.subr.mxu0 0.0
        %489 = vmatpush1.msra.mxu0 0.0
        %490 = vmatprep.subr.mxu0 0.0
        %491 = vmatpush1.msra.mxu0 0.0
        %492 = vmatprep.subr.mxu0 0.0
        %493 = vmatpush1.msra.mxu0 0.0
        %494 = vmatprep.subr.mxu0 0.0
        %495 = vmatpush1.msra.mxu0 0.0
        %496 = vmatprep.subr.mxu0 0.0
        %497 = vmatpush1.msra.mxu0 0.0
        %498 = vmatprep.subr.mxu0 0.0
        %499 = vmatpush1.msra.mxu0 0.0
        %500 = vmatprep.subr.mxu0 0.0
        %501 = vmatpush1.msra.mxu0 0.0
        %502 = vmatprep.subr.mxu0 0.0
        %503 = vmatpush1.msra.mxu0 0.0
        %504 = vmatprep.subr.mxu0 0.0
        %505 = vmatpush1.msra.mxu0 0.0
        %506 = vmatprep.subr.mxu0 0.0
        %507 = vmatpush1.msra.mxu0 0.0
        %508 = vmatprep.subr.mxu0 0.0
        %509 = vmatpush1.msra.mxu0 0.0
        %510 = vmatprep.subr.mxu0 0.0
        %511 = vmatpush1.msra.mxu0 0.0
        %512 = vmatprep.subr.mxu0 0.0
        %513 = vmatpush1.msra.mxu0 0.0
        %514 = vmatprep.subr.mxu0 0.0
        %515 = vmatpush1.msra.mxu0 0.0
        %516 = vmatprep.subr.mxu0 0.0
        %517 = vmatpush1.msra.mxu0 0.0
        %518 = vmatprep.subr.mxu0 0.0
        %519 = vmatpush1.msra.mxu0 0.0
        %520 = vmatprep.subr.mxu0 0.0
        %521 = vmatpush1.msra.mxu0 0.0
        %522 = vmatprep.subr.mxu0 0.0
        %523 = vmatpush1.msra.mxu0 0.0
        %524 = vmatprep.subr.mxu0 0.0
        %525 = vmatpush1.msra.mxu0 0.0
        %526 = vmatprep.subr.mxu0 0.0
        %527 = vmatpush1.msra.mxu0 0.0
        %528 = vmatprep.subr.mxu0 0.0
        %529 = vmatpush1.msra.mxu0 0.0
        %530 = vmatprep.subr.mxu0 0.0
        %531 = vmatpush1.msra.mxu0 0.0
        %532 = vmatprep.subr.mxu0 0.0
        %533 = vmatpush1.msra.mxu0 0.0
        %534 = vmatprep.subr.mxu0 0.0
        %535 = vmatpush1.msra.mxu0 0.0
        %536 = vmatprep.subr.mxu0 0.0
        %537 = vmatpush1.msra.mxu0 0.0
        %538 = vmatprep.subr.mxu0 0.0
        %539 = vmatpush1.msra.mxu0 0.0
        %540 = vmatprep.mubr.f32.mxu0 0.0
        %541 = vmatmul.mubr.f32.gmra.mrb[0].mxu0 %v474
        %v542 = vpop.f32.mrb[0].mxu0
        %v543 = vadd.f32 0.0, %v542
        %v544 = vpop.f32.mrb[0].mxu0
        %v545 = vadd.f32 0.0, %v544
        %546 = vdwg.mxu0
        %v547 = vadd.f32 %v445, %v543
        %v548 = vadd.f32 %v447, %v545
        %549 = vrot.lane.b32.xlu0 %v250, 1
        %v550 = vpop.permute.xlu0 %549
        %551 = vrot.lane.b32.xlu0 %v251, 1
        %v552 = vpop.permute.xlu0 %551
        %vm553 = vcmp.lt.s32.totalorder %v257, 1
        %v554 = vsel %vm553, %v550, %v552
        %v555 = vsel %vm553, %v552, %v550
        %s556 = scalar_lea.vmem %s5, 6
        %v557 = vld [vmem:[%s556] sm:$0x3]
        %v559 = vlaneseq
        %v560 = vshrl.u32 %v559, 7
        %v561 = vsub.s32 0, %v560
        %v562 = vrot.slane %v557, %v561
        %v563 = vlaneseq
        %v564 = vshrl.u32 %v563, 7
        %v565 = vsub.s32 1, %v564
        %v566 = vrot.slane %v557, %v565
        %v569 = vmul.f32 %v555, %v562
        %v570 = vmul.f32 %v554, %v566
        %s571 = scalar_lea.vmem %s1, 24
        %v572 = vld [vmem:[%s571] sm:$0xff]
        %v574 = vsel %vm300, %v572, 0
        %576 = vmatprep.subr.mxu0 %v570
        %577 = vmatpush1.msra.mxu0 %v569
        %578 = vmatprep.subr.mxu0 0.0
        %579 = vmatpush1.msra.mxu0 0.0
        %580 = vmatprep.subr.mxu0 0.0
        %581 = vmatpush1.msra.mxu0 0.0
        %582 = vmatprep.subr.mxu0 0.0
        %583 = vmatpush1.msra.mxu0 0.0
        %584 = vmatprep.subr.mxu0 0.0
        %585 = vmatpush1.msra.mxu0 0.0
        %586 = vmatprep.subr.mxu0 0.0
        %587 = vmatpush1.msra.mxu0 0.0
        %588 = vmatprep.subr.mxu0 0.0
        %589 = vmatpush1.msra.mxu0 0.0
        %590 = vmatprep.subr.mxu0 0.0
        %591 = vmatpush1.msra.mxu0 0.0
        %592 = vmatprep.subr.mxu0 0.0
        %593 = vmatpush1.msra.mxu0 0.0
        %594 = vmatprep.subr.mxu0 0.0
        %595 = vmatpush1.msra.mxu0 0.0
        %596 = vmatprep.subr.mxu0 0.0
        %597 = vmatpush1.msra.mxu0 0.0
        %598 = vmatprep.subr.mxu0 0.0
        %599 = vmatpush1.msra.mxu0 0.0
        %600 = vmatprep.subr.mxu0 0.0
        %601 = vmatpush1.msra.mxu0 0.0
        %602 = vmatprep.subr.mxu0 0.0
        %603 = vmatpush1.msra.mxu0 0.0
        %604 = vmatprep.subr.mxu0 0.0
        %605 = vmatpush1.msra.mxu0 0.0
        %606 = vmatprep.subr.mxu0 0.0
        %607 = vmatpush1.msra.mxu0 0.0
        %608 = vmatprep.subr.mxu0 0.0
        %609 = vmatpush1.msra.mxu0 0.0
        %610 = vmatprep.subr.mxu0 0.0
        %611 = vmatpush1.msra.mxu0 0.0
        %612 = vmatprep.subr.mxu0 0.0
        %613 = vmatpush1.msra.mxu0 0.0
        %614 = vmatprep.subr.mxu0 0.0
        %615 = vmatpush1.msra.mxu0 0.0
        %616 = vmatprep.subr.mxu0 0.0
        %617 = vmatpush1.msra.mxu0 0.0
        %618 = vmatprep.subr.mxu0 0.0
        %619 = vmatpush1.msra.mxu0 0.0
        %620 = vmatprep.subr.mxu0 0.0
        %621 = vmatpush1.msra.mxu0 0.0
        %622 = vmatprep.subr.mxu0 0.0
        %623 = vmatpush1.msra.mxu0 0.0
        %624 = vmatprep.subr.mxu0 0.0
        %625 = vmatpush1.msra.mxu0 0.0
        %626 = vmatprep.subr.mxu0 0.0
        %627 = vmatpush1.msra.mxu0 0.0
        %628 = vmatprep.subr.mxu0 0.0
        %629 = vmatpush1.msra.mxu0 0.0
        %630 = vmatprep.subr.mxu0 0.0
        %631 = vmatpush1.msra.mxu0 0.0
        %632 = vmatprep.subr.mxu0 0.0
        %633 = vmatpush1.msra.mxu0 0.0
        %634 = vmatprep.subr.mxu0 0.0
        %635 = vmatpush1.msra.mxu0 0.0
        %636 = vmatprep.subr.mxu0 0.0
        %637 = vmatpush1.msra.mxu0 0.0
        %638 = vmatprep.subr.mxu0 0.0
        %639 = vmatpush1.msra.mxu0 0.0
        %640 = vmatprep.mubr.f32.mxu0 0.0
        %641 = vmatmul.mubr.f32.gmra.mrb[0].mxu0 %v574
        %v642 = vpop.f32.mrb[0].mxu0
        %v643 = vadd.f32 0.0, %v642
        %v644 = vpop.f32.mrb[0].mxu0
        %v645 = vadd.f32 0.0, %v644
        %646 = vdwg.mxu0
        %v647 = vadd.f32 %v547, %v643
        %v648 = vadd.f32 %v548, %v645
        %s649 = scalar_lea.vmem %s5, 8
        %v650 = vld [vmem:[%s649] sm:$0x3]
        %v652 = vlaneseq
        %v653 = vshrl.u32 %v652, 7
        %v654 = vsub.s32 0, %v653
        %v655 = vrot.slane %v650, %v654
        %v656 = vlaneseq
        %v657 = vshrl.u32 %v656, 7
        %v658 = vsub.s32 1, %v657
        %v659 = vrot.slane %v650, %v658
        %v662 = vmul.f32 %v250, %v655
        %v663 = vmul.f32 %v251, %v659
        %s664 = scalar_lea.vmem %s1, 32
        %v665 = vld [vmem:[%s664] sm:$0xff]
        %v667 = vsel %vm300, %v665, 0
        %669 = vmatprep.subr.mxu0 %v663
        %670 = vmatpush1.msra.mxu0 %v662
        %671 = vmatprep.subr.mxu0 0.0
        %672 = vmatpush1.msra.mxu0 0.0
        %673 = vmatprep.subr.mxu0 0.0
        %674 = vmatpush1.msra.mxu0 0.0
        %675 = vmatprep.subr.mxu0 0.0
        %676 = vmatpush1.msra.mxu0 0.0
        %677 = vmatprep.subr.mxu0 0.0
        %678 = vmatpush1.msra.mxu0 0.0
        %679 = vmatprep.subr.mxu0 0.0
        %680 = vmatpush1.msra.mxu0 0.0
        %681 = vmatprep.subr.mxu0 0.0
        %682 = vmatpush1.msra.mxu0 0.0
        %683 = vmatprep.subr.mxu0 0.0
        %684 = vmatpush1.msra.mxu0 0.0
        %685 = vmatprep.subr.mxu0 0.0
        %686 = vmatpush1.msra.mxu0 0.0
        %687 = vmatprep.subr.mxu0 0.0
        %688 = vmatpush1.msra.mxu0 0.0
        %689 = vmatprep.subr.mxu0 0.0
        %690 = vmatpush1.msra.mxu0 0.0
        %691 = vmatprep.subr.mxu0 0.0
        %692 = vmatpush1.msra.mxu0 0.0
        %693 = vmatprep.subr.mxu0 0.0
        %694 = vmatpush1.msra.mxu0 0.0
        %695 = vmatprep.subr.mxu0 0.0
        %696 = vmatpush1.msra.mxu0 0.0
        %697 = vmatprep.subr.mxu0 0.0
        %698 = vmatpush1.msra.mxu0 0.0
        %699 = vmatprep.subr.mxu0 0.0
        %700 = vmatpush1.msra.mxu0 0.0
        %701 = vmatprep.subr.mxu0 0.0
        %702 = vmatpush1.msra.mxu0 0.0
        %703 = vmatprep.subr.mxu0 0.0
        %704 = vmatpush1.msra.mxu0 0.0
        %705 = vmatprep.subr.mxu0 0.0
        %706 = vmatpush1.msra.mxu0 0.0
        %707 = vmatprep.subr.mxu0 0.0
        %708 = vmatpush1.msra.mxu0 0.0
        %709 = vmatprep.subr.mxu0 0.0
        %710 = vmatpush1.msra.mxu0 0.0
        %711 = vmatprep.subr.mxu0 0.0
        %712 = vmatpush1.msra.mxu0 0.0
        %713 = vmatprep.subr.mxu0 0.0
        %714 = vmatpush1.msra.mxu0 0.0
        %715 = vmatprep.subr.mxu0 0.0
        %716 = vmatpush1.msra.mxu0 0.0
        %717 = vmatprep.subr.mxu0 0.0
        %718 = vmatpush1.msra.mxu0 0.0
        %719 = vmatprep.subr.mxu0 0.0
        %720 = vmatpush1.msra.mxu0 0.0
        %721 = vmatprep.subr.mxu0 0.0
        %722 = vmatpush1.msra.mxu0 0.0
        %723 = vmatprep.subr.mxu0 0.0
        %724 = vmatpush1.msra.mxu0 0.0
        %725 = vmatprep.subr.mxu0 0.0
        %726 = vmatpush1.msra.mxu0 0.0
        %727 = vmatprep.subr.mxu0 0.0
        %728 = vmatpush1.msra.mxu0 0.0
        %729 = vmatprep.subr.mxu0 0.0
        %730 = vmatpush1.msra.mxu0 0.0
        %731 = vmatprep.subr.mxu0 0.0
        %732 = vmatpush1.msra.mxu0 0.0
        %733 = vmatprep.mubr.f32.mxu0 0.0
        %734 = vmatmul.mubr.f32.gmra.mrb[0].mxu0 %v667
        %v735 = vpop.f32.mrb[0].mxu0
        %v736 = vadd.f32 0.0, %v735
        %v737 = vpop.f32.mrb[0].mxu0
        %v738 = vadd.f32 0.0, %v737
        %739 = vdwg.mxu0
        %v740 = vadd.f32 %v647, %v736
        %v741 = vadd.f32 %v648, %v738
        %742 = vrot.lane.b32.xlu0 %v250, 127
        %v743 = vpop.permute.xlu0 %742
        %744 = vrot.lane.b32.xlu0 %v251, 127
        %v745 = vpop.permute.xlu0 %744
        %vm746 = vcmp.lt.s32.totalorder %v257, 127
        %v747 = vsel %vm746, %v743, %v745
        %v748 = vsel %vm746, %v745, %v743
        %s749 = scalar_lea.vmem %s5, 10
        %v750 = vld [vmem:[%s749] sm:$0x3]
        %v752 = vlaneseq
        %v753 = vshrl.u32 %v752, 7
        %v754 = vsub.s32 0, %v753
        %v755 = vrot.slane %v750, %v754
        %v756 = vlaneseq
        %v757 = vshrl.u32 %v756, 7
        %v758 = vsub.s32 1, %v757
        %v759 = vrot.slane %v750, %v758
        %v762 = vmul.f32 %v747, %v755
        %v763 = vmul.f32 %v748, %v759
        %s764 = scalar_lea.vmem %s1, 40
        %v765 = vld [vmem:[%s764] sm:$0xff]
        %v767 = vsel %vm300, %v765, 0
        %769 = vmatprep.subr.mxu0 %v763
        %770 = vmatpush1.msra.mxu0 %v762
        %771 = vmatprep.subr.mxu0 0.0
        %772 = vmatpush1.msra.mxu0 0.0
        %773 = vmatprep.subr.mxu0 0.0
        %774 = vmatpush1.msra.mxu0 0.0
        %775 = vmatprep.subr.mxu0 0.0
        %776 = vmatpush1.msra.mxu0 0.0
        %777 = vmatprep.subr.mxu0 0.0
        %778 = vmatpush1.msra.mxu0 0.0
        %779 = vmatprep.subr.mxu0 0.0
        %780 = vmatpush1.msra.mxu0 0.0
        %781 = vmatprep.subr.mxu0 0.0
        %782 = vmatpush1.msra.mxu0 0.0
        %783 = vmatprep.subr.mxu0 0.0
        %784 = vmatpush1.msra.mxu0 0.0
        %785 = vmatprep.subr.mxu0 0.0
        %786 = vmatpush1.msra.mxu0 0.0
        %787 = vmatprep.subr.mxu0 0.0
        %788 = vmatpush1.msra.mxu0 0.0
        %789 = vmatprep.subr.mxu0 0.0
        %790 = vmatpush1.msra.mxu0 0.0
        %791 = vmatprep.subr.mxu0 0.0
        %792 = vmatpush1.msra.mxu0 0.0
        %793 = vmatprep.subr.mxu0 0.0
        %794 = vmatpush1.msra.mxu0 0.0
        %795 = vmatprep.subr.mxu0 0.0
        %796 = vmatpush1.msra.mxu0 0.0
        %797 = vmatprep.subr.mxu0 0.0
        %798 = vmatpush1.msra.mxu0 0.0
        %799 = vmatprep.subr.mxu0 0.0
        %800 = vmatpush1.msra.mxu0 0.0
        %801 = vmatprep.subr.mxu0 0.0
        %802 = vmatpush1.msra.mxu0 0.0
        %803 = vmatprep.subr.mxu0 0.0
        %804 = vmatpush1.msra.mxu0 0.0
        %805 = vmatprep.subr.mxu0 0.0
        %806 = vmatpush1.msra.mxu0 0.0
        %807 = vmatprep.subr.mxu0 0.0
        %808 = vmatpush1.msra.mxu0 0.0
        %809 = vmatprep.subr.mxu0 0.0
        %810 = vmatpush1.msra.mxu0 0.0
        %811 = vmatprep.subr.mxu0 0.0
        %812 = vmatpush1.msra.mxu0 0.0
        %813 = vmatprep.subr.mxu0 0.0
        %814 = vmatpush1.msra.mxu0 0.0
        %815 = vmatprep.subr.mxu0 0.0
        %816 = vmatpush1.msra.mxu0 0.0
        %817 = vmatprep.subr.mxu0 0.0
        %818 = vmatpush1.msra.mxu0 0.0
        %819 = vmatprep.subr.mxu0 0.0
        %820 = vmatpush1.msra.mxu0 0.0
        %821 = vmatprep.subr.mxu0 0.0
        %822 = vmatpush1.msra.mxu0 0.0
        %823 = vmatprep.subr.mxu0 0.0
        %824 = vmatpush1.msra.mxu0 0.0
        %825 = vmatprep.subr.mxu0 0.0
        %826 = vmatpush1.msra.mxu0 0.0
        %827 = vmatprep.subr.mxu0 0.0
        %828 = vmatpush1.msra.mxu0 0.0
        %829 = vmatprep.subr.mxu0 0.0
        %830 = vmatpush1.msra.mxu0 0.0
        %831 = vmatprep.subr.mxu0 0.0
        %832 = vmatpush1.msra.mxu0 0.0
        %833 = vmatprep.mubr.f32.mxu0 0.0
        %834 = vmatmul.mubr.f32.gmra.mrb[0].mxu0 %v767
        %v835 = vpop.f32.mrb[0].mxu0
        %v836 = vadd.f32 0.0, %v835
        %v837 = vpop.f32.mrb[0].mxu0
        %v838 = vadd.f32 0.0, %v837
        %839 = vdwg.mxu0
        %v840 = vadd.f32 %v740, %v836
        %v841 = vadd.f32 %v741, %v838
        %842 = vrot.lane.b32.xlu0 %v250, 113
        %v843 = vpop.permute.xlu0 %842
        %844 = vrot.lane.b32.xlu0 %v251, 113
        %v845 = vpop.permute.xlu0 %844
        %vm846 = vcmp.lt.s32.totalorder %v257, 113
        %v847 = vsel %vm846, %v843, %v845
        %v848 = vsel %vm846, %v845, %v843
        %s849 = scalar_lea.vmem %s5, 12
        %v850 = vld [vmem:[%s849] sm:$0x3]
        %v852 = vlaneseq
        %v853 = vshrl.u32 %v852, 7
        %v854 = vsub.s32 0, %v853
        %v855 = vrot.slane %v850, %v854
        %v856 = vlaneseq
        %v857 = vshrl.u32 %v856, 7
        %v858 = vsub.s32 1, %v857
        %v859 = vrot.slane %v850, %v858
        %v862 = vmul.f32 %v847, %v855
        %v863 = vmul.f32 %v848, %v859
        %s864 = scalar_lea.vmem %s1, 48
        %v865 = vld [vmem:[%s864] sm:$0xff]
        %v867 = vsel %vm300, %v865, 0
        %869 = vmatprep.subr.mxu0 %v863
        %870 = vmatpush1.msra.mxu0 %v862
        %871 = vmatprep.subr.mxu0 0.0
        %872 = vmatpush1.msra.mxu0 0.0
        %873 = vmatprep.subr.mxu0 0.0
        %874 = vmatpush1.msra.mxu0 0.0
        %875 = vmatprep.subr.mxu0 0.0
        %876 = vmatpush1.msra.mxu0 0.0
        %877 = vmatprep.subr.mxu0 0.0
        %878 = vmatpush1.msra.mxu0 0.0
        %879 = vmatprep.subr.mxu0 0.0
        %880 = vmatpush1.msra.mxu0 0.0
        %881 = vmatprep.subr.mxu0 0.0
        %882 = vmatpush1.msra.mxu0 0.0
        %883 = vmatprep.subr.mxu0 0.0
        %884 = vmatpush1.msra.mxu0 0.0
        %885 = vmatprep.subr.mxu0 0.0
        %886 = vmatpush1.msra.mxu0 0.0
        %887 = vmatprep.subr.mxu0 0.0
        %888 = vmatpush1.msra.mxu0 0.0
        %889 = vmatprep.subr.mxu0 0.0
        %890 = vmatpush1.msra.mxu0 0.0
        %891 = vmatprep.subr.mxu0 0.0
        %892 = vmatpush1.msra.mxu0 0.0
        %893 = vmatprep.subr.mxu0 0.0
        %894 = vmatpush1.msra.mxu0 0.0
        %895 = vmatprep.subr.mxu0 0.0
        %896 = vmatpush1.msra.mxu0 0.0
        %897 = vmatprep.subr.mxu0 0.0
        %898 = vmatpush1.msra.mxu0 0.0
        %899 = vmatprep.subr.mxu0 0.0
        %900 = vmatpush1.msra.mxu0 0.0
        %901 = vmatprep.subr.mxu0 0.0
        %902 = vmatpush1.msra.mxu0 0.0
        %903 = vmatprep.subr.mxu0 0.0
        %904 = vmatpush1.msra.mxu0 0.0
        %905 = vmatprep.subr.mxu0 0.0
        %906 = vmatpush1.msra.mxu0 0.0
        %907 = vmatprep.subr.mxu0 0.0
        %908 = vmatpush1.msra.mxu0 0.0
        %909 = vmatprep.subr.mxu0 0.0
        %910 = vmatpush1.msra.mxu0 0.0
        %911 = vmatprep.subr.mxu0 0.0
        %912 = vmatpush1.msra.mxu0 0.0
        %913 = vmatprep.subr.mxu0 0.0
        %914 = vmatpush1.msra.mxu0 0.0
        %915 = vmatprep.subr.mxu0 0.0
        %916 = vmatpush1.msra.mxu0 0.0
        %917 = vmatprep.subr.mxu0 0.0
        %918 = vmatpush1.msra.mxu0 0.0
        %919 = vmatprep.subr.mxu0 0.0
        %920 = vmatpush1.msra.mxu0 0.0
        %921 = vmatprep.subr.mxu0 0.0
        %922 = vmatpush1.msra.mxu0 0.0
        %923 = vmatprep.subr.mxu0 0.0
        %924 = vmatpush1.msra.mxu0 0.0
        %925 = vmatprep.subr.mxu0 0.0
        %926 = vmatpush1.msra.mxu0 0.0
        %927 = vmatprep.subr.mxu0 0.0
        %928 = vmatpush1.msra.mxu0 0.0
        %929 = vmatprep.subr.mxu0 0.0
        %930 = vmatpush1.msra.mxu0 0.0
        %931 = vmatprep.subr.mxu0 0.0
        %932 = vmatpush1.msra.mxu0 0.0
        %933 = vmatprep.mubr.f32.mxu0 0.0
        %934 = vmatmul.mubr.f32.gmra.mrb[0].mxu0 %v867
        %v935 = vpop.f32.mrb[0].mxu0
        %v936 = vadd.f32 0.0, %v935
        %v937 = vpop.f32.mrb[0].mxu0
        %v938 = vadd.f32 0.0, %v937
        %939 = vdwg.mxu0
        %v940 = vadd.f32 %v840, %v936
        %v941 = vadd.f32 %v841, %v938
        %942 = vrot.lane.b32.xlu0 %v250, 112
        %v943 = vpop.permute.xlu0 %942
        %944 = vrot.lane.b32.xlu0 %v251, 112
        %v945 = vpop.permute.xlu0 %944
        %vm946 = vcmp.lt.s32.totalorder %v257, 112
        %v947 = vsel %vm946, %v943, %v945
        %v948 = vsel %vm946, %v945, %v943
        %s949 = scalar_lea.vmem %s5, 14
        %v950 = vld [vmem:[%s949] sm:$0x3]
        %v952 = vlaneseq
        %v953 = vshrl.u32 %v952, 7
        %v954 = vsub.s32 0, %v953
        %v955 = vrot.slane %v950, %v954
        %v956 = vlaneseq
        %v957 = vshrl.u32 %v956, 7
        %v958 = vsub.s32 1, %v957
        %v959 = vrot.slane %v950, %v958
        %v962 = vmul.f32 %v947, %v955
        %v963 = vmul.f32 %v948, %v959
        %s964 = scalar_lea.vmem %s1, 56
        %v965 = vld [vmem:[%s964] sm:$0xff]
        %v967 = vsel %vm300, %v965, 0
        %969 = vmatprep.subr.mxu0 %v963
        %970 = vmatpush1.msra.mxu0 %v962
        %971 = vmatprep.subr.mxu0 0.0
        %972 = vmatpush1.msra.mxu0 0.0
        %973 = vmatprep.subr.mxu0 0.0
        %974 = vmatpush1.msra.mxu0 0.0
        %975 = vmatprep.subr.mxu0 0.0
        %976 = vmatpush1.msra.mxu0 0.0
        %977 = vmatprep.subr.mxu0 0.0
        %978 = vmatpush1.msra.mxu0 0.0
        %979 = vmatprep.subr.mxu0 0.0
        %980 = vmatpush1.msra.mxu0 0.0
        %981 = vmatprep.subr.mxu0 0.0
        %982 = vmatpush1.msra.mxu0 0.0
        %983 = vmatprep.subr.mxu0 0.0
        %984 = vmatpush1.msra.mxu0 0.0
        %985 = vmatprep.subr.mxu0 0.0
        %986 = vmatpush1.msra.mxu0 0.0
        %987 = vmatprep.subr.mxu0 0.0
        %988 = vmatpush1.msra.mxu0 0.0
        %989 = vmatprep.subr.mxu0 0.0
        %990 = vmatpush1.msra.mxu0 0.0
        %991 = vmatprep.subr.mxu0 0.0
        %992 = vmatpush1.msra.mxu0 0.0
        %993 = vmatprep.subr.mxu0 0.0
        %994 = vmatpush1.msra.mxu0 0.0
        %995 = vmatprep.subr.mxu0 0.0
        %996 = vmatpush1.msra.mxu0 0.0
        %997 = vmatprep.subr.mxu0 0.0
        %998 = vmatpush1.msra.mxu0 0.0
        %999 = vmatprep.subr.mxu0 0.0
        %1000 = vmatpush1.msra.mxu0 0.0
        %1001 = vmatprep.subr.mxu0 0.0
        %1002 = vmatpush1.msra.mxu0 0.0
        %1003 = vmatprep.subr.mxu0 0.0
        %1004 = vmatpush1.msra.mxu0 0.0
        %1005 = vmatprep.subr.mxu0 0.0
        %1006 = vmatpush1.msra.mxu0 0.0
        %1007 = vmatprep.subr.mxu0 0.0
        %1008 = vmatpush1.msra.mxu0 0.0
        %1009 = vmatprep.subr.mxu0 0.0
        %1010 = vmatpush1.msra.mxu0 0.0
        %1011 = vmatprep.subr.mxu0 0.0
        %1012 = vmatpush1.msra.mxu0 0.0
        %1013 = vmatprep.subr.mxu0 0.0
        %1014 = vmatpush1.msra.mxu0 0.0
        %1015 = vmatprep.subr.mxu0 0.0
        %1016 = vmatpush1.msra.mxu0 0.0
        %1017 = vmatprep.subr.mxu0 0.0
        %1018 = vmatpush1.msra.mxu0 0.0
        %1019 = vmatprep.subr.mxu0 0.0
        %1020 = vmatpush1.msra.mxu0 0.0
        %1021 = vmatprep.subr.mxu0 0.0
        %1022 = vmatpush1.msra.mxu0 0.0
        %1023 = vmatprep.subr.mxu0 0.0
        %1024 = vmatpush1.msra.mxu0 0.0
        %1025 = vmatprep.subr.mxu0 0.0
        %1026 = vmatpush1.msra.mxu0 0.0
        %1027 = vmatprep.subr.mxu0 0.0
        %1028 = vmatpush1.msra.mxu0 0.0
        %1029 = vmatprep.subr.mxu0 0.0
        %1030 = vmatpush1.msra.mxu0 0.0
        %1031 = vmatprep.subr.mxu0 0.0
        %1032 = vmatpush1.msra.mxu0 0.0
        %1033 = vmatprep.mubr.f32.mxu0 0.0
        %1034 = vmatmul.mubr.f32.gmra.mrb[0].mxu0 %v967
        %v1035 = vpop.f32.mrb[0].mxu0
        %v1036 = vadd.f32 0.0, %v1035
        %v1037 = vpop.f32.mrb[0].mxu0
        %v1038 = vadd.f32 0.0, %v1037
        %1039 = vdwg.mxu0
        %v1040 = vadd.f32 %v940, %v1036
        %v1041 = vadd.f32 %v941, %v1038
        %1042 = vrot.lane.b32.xlu0 %v250, 111
        %v1043 = vpop.permute.xlu0 %1042
        %1044 = vrot.lane.b32.xlu0 %v251, 111
        %v1045 = vpop.permute.xlu0 %1044
        %vm1046 = vcmp.lt.s32.totalorder %v257, 111
        %v1047 = vsel %vm1046, %v1043, %v1045
        %v1048 = vsel %vm1046, %v1045, %v1043
        %s1049 = scalar_lea.vmem %s5, 16
        %v1050 = vld [vmem:[%s1049] sm:$0x3]
        %v1052 = vlaneseq
        %v1053 = vshrl.u32 %v1052, 7
        %v1054 = vsub.s32 0, %v1053
        %v1055 = vrot.slane %v1050, %v1054
        %v1056 = vlaneseq
        %v1057 = vshrl.u32 %v1056, 7
        %v1058 = vsub.s32 1, %v1057
        %v1059 = vrot.slane %v1050, %v1058
        %v1062 = vmul.f32 %v1047, %v1055
        %v1063 = vmul.f32 %v1048, %v1059
        %s1064 = scalar_lea.vmem %s1, 64
        %v1065 = vld [vmem:[%s1064] sm:$0xff]
        %v1067 = vsel %vm300, %v1065, 0
        %1069 = vmatprep.subr.mxu0 %v1063
        %1070 = vmatpush1.msra.mxu0 %v1062
        %1071 = vmatprep.subr.mxu0 0.0
        %1072 = vmatpush1.msra.mxu0 0.0
        %1073 = vmatprep.subr.mxu0 0.0
        %1074 = vmatpush1.msra.mxu0 0.0
        %1075 = vmatprep.subr.mxu0 0.0
        %1076 = vmatpush1.msra.mxu0 0.0
        %1077 = vmatprep.subr.mxu0 0.0
        %1078 = vmatpush1.msra.mxu0 0.0
        %1079 = vmatprep.subr.mxu0 0.0
        %1080 = vmatpush1.msra.mxu0 0.0
        %1081 = vmatprep.subr.mxu0 0.0
        %1082 = vmatpush1.msra.mxu0 0.0
        %1083 = vmatprep.subr.mxu0 0.0
        %1084 = vmatpush1.msra.mxu0 0.0
        %1085 = vmatprep.subr.mxu0 0.0
        %1086 = vmatpush1.msra.mxu0 0.0
        %1087 = vmatprep.subr.mxu0 0.0
        %1088 = vmatpush1.msra.mxu0 0.0
        %1089 = vmatprep.subr.mxu0 0.0
        %1090 = vmatpush1.msra.mxu0 0.0
        %1091 = vmatprep.subr.mxu0 0.0
        %1092 = vmatpush1.msra.mxu0 0.0
        %1093 = vmatprep.subr.mxu0 0.0
        %1094 = vmatpush1.msra.mxu0 0.0
        %1095 = vmatprep.subr.mxu0 0.0
        %1096 = vmatpush1.msra.mxu0 0.0
        %1097 = vmatprep.subr.mxu0 0.0
        %1098 = vmatpush1.msra.mxu0 0.0
        %1099 = vmatprep.subr.mxu0 0.0
        %1100 = vmatpush1.msra.mxu0 0.0
        %1101 = vmatprep.subr.mxu0 0.0
        %1102 = vmatpush1.msra.mxu0 0.0
        %1103 = vmatprep.subr.mxu0 0.0
        %1104 = vmatpush1.msra.mxu0 0.0
        %1105 = vmatprep.subr.mxu0 0.0
        %1106 = vmatpush1.msra.mxu0 0.0
        %1107 = vmatprep.subr.mxu0 0.0
        %1108 = vmatpush1.msra.mxu0 0.0
        %1109 = vmatprep.subr.mxu0 0.0
        %1110 = vmatpush1.msra.mxu0 0.0
        %1111 = vmatprep.subr.mxu0 0.0
        %1112 = vmatpush1.msra.mxu0 0.0
        %1113 = vmatprep.subr.mxu0 0.0
        %1114 = vmatpush1.msra.mxu0 0.0
        %1115 = vmatprep.subr.mxu0 0.0
        %1116 = vmatpush1.msra.mxu0 0.0
        %1117 = vmatprep.subr.mxu0 0.0
        %1118 = vmatpush1.msra.mxu0 0.0
        %1119 = vmatprep.subr.mxu0 0.0
        %1120 = vmatpush1.msra.mxu0 0.0
        %1121 = vmatprep.subr.mxu0 0.0
        %1122 = vmatpush1.msra.mxu0 0.0
        %1123 = vmatprep.subr.mxu0 0.0
        %1124 = vmatpush1.msra.mxu0 0.0
        %1125 = vmatprep.subr.mxu0 0.0
        %1126 = vmatpush1.msra.mxu0 0.0
        %1127 = vmatprep.subr.mxu0 0.0
        %1128 = vmatpush1.msra.mxu0 0.0
        %1129 = vmatprep.subr.mxu0 0.0
        %1130 = vmatpush1.msra.mxu0 0.0
        %1131 = vmatprep.subr.mxu0 0.0
        %1132 = vmatpush1.msra.mxu0 0.0
        %1133 = vmatprep.mubr.f32.mxu0 0.0
        %1134 = vmatmul.mubr.f32.gmra.mrb[0].mxu0 %v1067
        %v1135 = vpop.f32.mrb[0].mxu0
        %v1136 = vadd.f32 0.0, %v1135
        %v1137 = vpop.f32.mrb[0].mxu0
        %v1138 = vadd.f32 0.0, %v1137
        %1139 = vdwg.mxu0
        %v1140 = vadd.f32 %v1040, %v1136
        %v1141 = vadd.f32 %v1041, %v1138
        %v1142 = vld [vmem:[%s2] sm:$0xff]
        %1144 = vset.pattern.permute.xlu0 0
        %1145 = vperm.xlu0 %1144, %v1142
        %v1146 = vpop.permute.xlu0 %1145
        %v1148 = vadd.f32 %v1140, %v1146
        %v1149 = vadd.f32 %v1141, %v1146
        %v1150 = vmax.f32 %v1148, 0.0
        %v1151 = vmax.f32 %v1149, 0.0
        %1152 = vrot.lane.b32.xlu0 %v1150, 17
        %v1153 = vpop.permute.xlu0 %1152
        %1154 = vrot.lane.b32.xlu0 %v1151, 17
        %v1155 = vpop.permute.xlu0 %1154
        %v1156 = vsel %vm258, %v1153, %v1155
        %v1157 = vsel %vm258, %v1155, %v1153
        %v1158 = vmul.f32 %v1157, %v266
        %v1159 = vmul.f32 %v1156, %v270
        %v1160 = vld [vmem:[%s3] sm:$0xff]
        %1161 = vrot.lane.b32.xlu0 %v1150, 16
        %v1162 = vpop.permute.xlu0 %1161
        %1163 = vrot.lane.b32.xlu0 %v1151, 16
        %v1164 = vpop.permute.xlu0 %1163
        %v1165 = vsel %vm280, %v1162, %v1164
        %v1166 = vsel %vm280, %v1164, %v1162
        %v1167 = vmul.f32 %v1166, %v289
        %v1168 = vmul.f32 %v1165, %v293
        %s1169 = scalar_lea.vmem %s3, 8
        %v1170 = vld [vmem:[%s1169] sm:$0xff]
        %v1172 = vsel %vm300, %v1170, 0
        %1174 = vmatprep.subr.mxu0 %v1168
        %1175 = vmatpush1.msra.mxu0 %v1167
        %1176 = vmatprep.subr.mxu0 0.0
        %1177 = vmatpush1.msra.mxu0 0.0
        %1178 = vmatprep.subr.mxu0 0.0
        %1179 = vmatpush1.msra.mxu0 0.0
        %1180 = vmatprep.subr.mxu0 0.0
        %1181 = vmatpush1.msra.mxu0 0.0
        %1182 = vmatprep.subr.mxu0 0.0
        %1183 = vmatpush1.msra.mxu0 0.0
        %1184 = vmatprep.subr.mxu0 0.0
        %1185 = vmatpush1.msra.mxu0 0.0
        %1186 = vmatprep.subr.mxu0 0.0
        %1187 = vmatpush1.msra.mxu0 0.0
        %1188 = vmatprep.subr.mxu0 0.0
        %1189 = vmatpush1.msra.mxu0 0.0
        %1190 = vmatprep.subr.mxu0 0.0
        %1191 = vmatpush1.msra.mxu0 0.0
        %1192 = vmatprep.subr.mxu0 0.0
        %1193 = vmatpush1.msra.mxu0 0.0
        %1194 = vmatprep.subr.mxu0 0.0
        %1195 = vmatpush1.msra.mxu0 0.0
        %1196 = vmatprep.subr.mxu0 0.0
        %1197 = vmatpush1.msra.mxu0 0.0
        %1198 = vmatprep.subr.mxu0 0.0
        %1199 = vmatpush1.msra.mxu0 0.0
        %1200 = vmatprep.subr.mxu0 0.0
        %1201 = vmatpush1.msra.mxu0 0.0
        %1202 = vmatprep.subr.mxu0 0.0
        %1203 = vmatpush1.msra.mxu0 0.0
        %1204 = vmatprep.subr.mxu0 0.0
        %1205 = vmatpush1.msra.mxu0 0.0
        %1206 = vmatprep.subr.mxu0 0.0
        %1207 = vmatpush1.msra.mxu0 0.0
        %1208 = vmatprep.subr.mxu0 0.0
        %1209 = vmatpush1.msra.mxu0 0.0
        %1210 = vmatprep.subr.mxu0 0.0
        %1211 = vmatpush1.msra.mxu0 0.0
        %1212 = vmatprep.subr.mxu0 0.0
        %1213 = vmatpush1.msra.mxu0 0.0
        %1214 = vmatprep.subr.mxu0 0.0
        %1215 = vmatpush1.msra.mxu0 0.0
        %1216 = vmatprep.subr.mxu0 0.0
        %1217 = vmatpush1.msra.mxu0 0.0
        %1218 = vmatprep.subr.mxu0 0.0
        %1219 = vmatpush1.msra.mxu0 0.0
        %1220 = vmatprep.subr.mxu0 0.0
        %1221 = vmatpush1.msra.mxu0 0.0
        %1222 = vmatprep.subr.mxu0 0.0
        %1223 = vmatpush1.msra.mxu0 0.0
        %1224 = vmatprep.subr.mxu0 0.0
        %1225 = vmatpush1.msra.mxu0 0.0
        %1226 = vmatprep.subr.mxu0 0.0
        %1227 = vmatpush1.msra.mxu0 0.0
        %1228 = vmatprep.subr.mxu0 0.0
        %1229 = vmatpush1.msra.mxu0 0.0
        %1230 = vmatprep.subr.mxu0 0.0
        %1231 = vmatpush1.msra.mxu0 0.0
        %1232 = vmatprep.subr.mxu0 0.0
        %1233 = vmatpush1.msra.mxu0 0.0
        %1234 = vmatprep.subr.mxu0 0.0
        %1235 = vmatpush1.msra.mxu0 0.0
        %1236 = vmatprep.subr.mxu0 0.0
        %1237 = vmatpush1.msra.mxu0 0.0
        %1238 = vmatprep.mubr.f32.mxu0 0.0
        %1239 = vmatmul.mubr.f32.gmra.mrb[0].mxu0 %v1172
        %v1240 = vpop.f32.mrb[0].mxu0
        %v1241 = vadd.f32 0.0, %v1240
        %v1242 = vpop.f32.mrb[0].mxu0
        %v1243 = vadd.f32 0.0, %v1242
        %1244 = vdwg.mxu0
        %v1246 = vsel %vm300, %v1160, 0
        %1248 = vmatprep.subr.mxu0 %v1159
        %1249 = vmatpush1.msra.mxu0 %v1158
        %1250 = vmatprep.subr.mxu0 0.0
        %1251 = vmatpush1.msra.mxu0 0.0
        %1252 = vmatprep.subr.mxu0 0.0
        %1253 = vmatpush1.msra.mxu0 0.0
        %1254 = vmatprep.subr.mxu0 0.0
        %1255 = vmatpush1.msra.mxu0 0.0
        %1256 = vmatprep.subr.mxu0 0.0
        %1257 = vmatpush1.msra.mxu0 0.0
        %1258 = vmatprep.subr.mxu0 0.0
        %1259 = vmatpush1.msra.mxu0 0.0
        %1260 = vmatprep.subr.mxu0 0.0
        %1261 = vmatpush1.msra.mxu0 0.0
        %1262 = vmatprep.subr.mxu0 0.0
        %1263 = vmatpush1.msra.mxu0 0.0
        %1264 = vmatprep.subr.mxu0 0.0
        %1265 = vmatpush1.msra.mxu0 0.0
        %1266 = vmatprep.subr.mxu0 0.0
        %1267 = vmatpush1.msra.mxu0 0.0
        %1268 = vmatprep.subr.mxu0 0.0
        %1269 = vmatpush1.msra.mxu0 0.0
        %1270 = vmatprep.subr.mxu0 0.0
        %1271 = vmatpush1.msra.mxu0 0.0
        %1272 = vmatprep.subr.mxu0 0.0
        %1273 = vmatpush1.msra.mxu0 0.0
        %1274 = vmatprep.subr.mxu0 0.0
        %1275 = vmatpush1.msra.mxu0 0.0
        %1276 = vmatprep.subr.mxu0 0.0
        %1277 = vmatpush1.msra.mxu0 0.0
        %1278 = vmatprep.subr.mxu0 0.0
        %1279 = vmatpush1.msra.mxu0 0.0
        %1280 = vmatprep.subr.mxu0 0.0
        %1281 = vmatpush1.msra.mxu0 0.0
        %1282 = vmatprep.subr.mxu0 0.0
        %1283 = vmatpush1.msra.mxu0 0.0
        %1284 = vmatprep.subr.mxu0 0.0
        %1285 = vmatpush1.msra.mxu0 0.0
        %1286 = vmatprep.subr.mxu0 0.0
        %1287 = vmatpush1.msra.mxu0 0.0
        %1288 = vmatprep.subr.mxu0 0.0
        %1289 = vmatpush1.msra.mxu0 0.0
        %1290 = vmatprep.subr.mxu0 0.0
        %1291 = vmatpush1.msra.mxu0 0.0
        %1292 = vmatprep.subr.mxu0 0.0
        %1293 = vmatpush1.msra.mxu0 0.0
        %1294 = vmatprep.subr.mxu0 0.0
        %1295 = vmatpush1.msra.mxu0 0.0
        %1296 = vmatprep.subr.mxu0 0.0
        %1297 = vmatpush1.msra.mxu0 0.0
        %1298 = vmatprep.subr.mxu0 0.0
        %1299 = vmatpush1.msra.mxu0 0.0
        %1300 = vmatprep.subr.mxu0 0.0
        %1301 = vmatpush1.msra.mxu0 0.0
        %1302 = vmatprep.subr.mxu0 0.0
        %1303 = vmatpush1.msra.mxu0 0.0
        %1304 = vmatprep.subr.mxu0 0.0
        %1305 = vmatpush1.msra.mxu0 0.0
        %1306 = vmatprep.subr.mxu0 0.0
        %1307 = vmatpush1.msra.mxu0 0.0
        %1308 = vmatprep.subr.mxu0 0.0
        %1309 = vmatpush1.msra.mxu0 0.0
        %1310 = vmatprep.subr.mxu0 0.0
        %1311 = vmatpush1.msra.mxu0 0.0
        %1312 = vmatprep.mubr.f32.mxu0 0.0
        %1313 = vmatmul.mubr.f32.gmra.mrb[0].mxu0 %v1246
        %v1314 = vpop.f32.mrb[0].mxu0
        %v1315 = vadd.f32 %v1241, %v1314
        %v1316 = vpop.f32.mrb[0].mxu0
        %v1317 = vadd.f32 %v1243, %v1316
        %1318 = vdwg.mxu0
        %1319 = vrot.lane.b32.xlu0 %v1150, 15
        %v1320 = vpop.permute.xlu0 %1319
        %1321 = vrot.lane.b32.xlu0 %v1151, 15
        %v1322 = vpop.permute.xlu0 %1321
        %v1323 = vsel %vm453, %v1320, %v1322
        %v1324 = vsel %vm453, %v1322, %v1320
        %v1325 = vmul.f32 %v1324, %v462
        %v1326 = vmul.f32 %v1323, %v466
        %s1327 = scalar_lea.vmem %s3, 16
        %v1328 = vld [vmem:[%s1327] sm:$0xff]
        %v1330 = vsel %vm300, %v1328, 0
        %1332 = vmatprep.subr.mxu0 %v1326
        %1333 = vmatpush1.msra.mxu0 %v1325
        %1334 = vmatprep.subr.mxu0 0.0
        %1335 = vmatpush1.msra.mxu0 0.0
        %1336 = vmatprep.subr.mxu0 0.0
        %1337 = vmatpush1.msra.mxu0 0.0
        %1338 = vmatprep.subr.mxu0 0.0
        %1339 = vmatpush1.msra.mxu0 0.0
        %1340 = vmatprep.subr.mxu0 0.0
        %1341 = vmatpush1.msra.mxu0 0.0
        %1342 = vmatprep.subr.mxu0 0.0
        %1343 = vmatpush1.msra.mxu0 0.0
        %1344 = vmatprep.subr.mxu0 0.0
        %1345 = vmatpush1.msra.mxu0 0.0
        %1346 = vmatprep.subr.mxu0 0.0
        %1347 = vmatpush1.msra.mxu0 0.0
        %1348 = vmatprep.subr.mxu0 0.0
        %1349 = vmatpush1.msra.mxu0 0.0
        %1350 = vmatprep.subr.mxu0 0.0
        %1351 = vmatpush1.msra.mxu0 0.0
        %1352 = vmatprep.subr.mxu0 0.0
        %1353 = vmatpush1.msra.mxu0 0.0
        %1354 = vmatprep.subr.mxu0 0.0
        %1355 = vmatpush1.msra.mxu0 0.0
        %1356 = vmatprep.subr.mxu0 0.0
        %1357 = vmatpush1.msra.mxu0 0.0
        %1358 = vmatprep.subr.mxu0 0.0
        %1359 = vmatpush1.msra.mxu0 0.0
        %1360 = vmatprep.subr.mxu0 0.0
        %1361 = vmatpush1.msra.mxu0 0.0
        %1362 = vmatprep.subr.mxu0 0.0
        %1363 = vmatpush1.msra.mxu0 0.0
        %1364 = vmatprep.subr.mxu0 0.0
        %1365 = vmatpush1.msra.mxu0 0.0
        %1366 = vmatprep.subr.mxu0 0.0
        %1367 = vmatpush1.msra.mxu0 0.0
        %1368 = vmatprep.subr.mxu0 0.0
        %1369 = vmatpush1.msra.mxu0 0.0
        %1370 = vmatprep.subr.mxu0 0.0
        %1371 = vmatpush1.msra.mxu0 0.0
        %1372 = vmatprep.subr.mxu0 0.0
        %1373 = vmatpush1.msra.mxu0 0.0
        %1374 = vmatprep.subr.mxu0 0.0
        %1375 = vmatpush1.msra.mxu0 0.0
        %1376 = vmatprep.subr.mxu0 0.0
        %1377 = vmatpush1.msra.mxu0 0.0
        %1378 = vmatprep.subr.mxu0 0.0
        %1379 = vmatpush1.msra.mxu0 0.0
        %1380 = vmatprep.subr.mxu0 0.0
        %1381 = vmatpush1.msra.mxu0 0.0
        %1382 = vmatprep.subr.mxu0 0.0
        %1383 = vmatpush1.msra.mxu0 0.0
        %1384 = vmatprep.subr.mxu0 0.0
        %1385 = vmatpush1.msra.mxu0 0.0
        %1386 = vmatprep.subr.mxu0 0.0
        %1387 = vmatpush1.msra.mxu0 0.0
        %1388 = vmatprep.subr.mxu0 0.0
        %1389 = vmatpush1.msra.mxu0 0.0
        %1390 = vmatprep.subr.mxu0 0.0
        %1391 = vmatpush1.msra.mxu0 0.0
        %1392 = vmatprep.subr.mxu0 0.0
        %1393 = vmatpush1.msra.mxu0 0.0
        %1394 = vmatprep.subr.mxu0 0.0
        %1395 = vmatpush1.msra.mxu0 0.0
        %1396 = vmatprep.mubr.f32.mxu0 0.0
        %1397 = vmatmul.mubr.f32.gmra.mrb[0].mxu0 %v1330
        %v1398 = vpop.f32.mrb[0].mxu0
        %v1399 = vadd.f32 0.0, %v1398
        %v1400 = vpop.f32.mrb[0].mxu0
        %v1401 = vadd.f32 0.0, %v1400
        %1402 = vdwg.mxu0
        %v1403 = vadd.f32 %v1315, %v1399
        %v1404 = vadd.f32 %v1317, %v1401
        %1405 = vrot.lane.b32.xlu0 %v1150, 1
        %v1406 = vpop.permute.xlu0 %1405
        %1407 = vrot.lane.b32.xlu0 %v1151, 1
        %v1408 = vpop.permute.xlu0 %1407
        %v1409 = vsel %vm553, %v1406, %v1408
        %v1410 = vsel %vm553, %v1408, %v1406
        %v1411 = vmul.f32 %v1410, %v562
        %v1412 = vmul.f32 %v1409, %v566
        %s1413 = scalar_lea.vmem %s3, 24
        %v1414 = vld [vmem:[%s1413] sm:$0xff]
        %v1416 = vsel %vm300, %v1414, 0
        %1418 = vmatprep.subr.mxu0 %v1412
        %1419 = vmatpush1.msra.mxu0 %v1411
        %1420 = vmatprep.subr.mxu0 0.0
        %1421 = vmatpush1.msra.mxu0 0.0
        %1422 = vmatprep.subr.mxu0 0.0
        %1423 = vmatpush1.msra.mxu0 0.0
        %1424 = vmatprep.subr.mxu0 0.0
        %1425 = vmatpush1.msra.mxu0 0.0
        %1426 = vmatprep.subr.mxu0 0.0
        %1427 = vmatpush1.msra.mxu0 0.0
        %1428 = vmatprep.subr.mxu0 0.0
        %1429 = vmatpush1.msra.mxu0 0.0
        %1430 = vmatprep.subr.mxu0 0.0
        %1431 = vmatpush1.msra.mxu0 0.0
        %1432 = vmatprep.subr.mxu0 0.0
        %1433 = vmatpush1.msra.mxu0 0.0
        %1434 = vmatprep.subr.mxu0 0.0
        %1435 = vmatpush1.msra.mxu0 0.0
        %1436 = vmatprep.subr.mxu0 0.0
        %1437 = vmatpush1.msra.mxu0 0.0
        %1438 = vmatprep.subr.mxu0 0.0
        %1439 = vmatpush1.msra.mxu0 0.0
        %1440 = vmatprep.subr.mxu0 0.0
        %1441 = vmatpush1.msra.mxu0 0.0
        %1442 = vmatprep.subr.mxu0 0.0
        %1443 = vmatpush1.msra.mxu0 0.0
        %1444 = vmatprep.subr.mxu0 0.0
        %1445 = vmatpush1.msra.mxu0 0.0
        %1446 = vmatprep.subr.mxu0 0.0
        %1447 = vmatpush1.msra.mxu0 0.0
        %1448 = vmatprep.subr.mxu0 0.0
        %1449 = vmatpush1.msra.mxu0 0.0
        %1450 = vmatprep.subr.mxu0 0.0
        %1451 = vmatpush1.msra.mxu0 0.0
        %1452 = vmatprep.subr.mxu0 0.0
        %1453 = vmatpush1.msra.mxu0 0.0
        %1454 = vmatprep.subr.mxu0 0.0
        %1455 = vmatpush1.msra.mxu0 0.0
        %1456 = vmatprep.subr.mxu0 0.0
        %1457 = vmatpush1.msra.mxu0 0.0
        %1458 = vmatprep.subr.mxu0 0.0
        %1459 = vmatpush1.msra.mxu0 0.0
        %1460 = vmatprep.subr.mxu0 0.0
        %1461 = vmatpush1.msra.mxu0 0.0
        %1462 = vmatprep.subr.mxu0 0.0
        %1463 = vmatpush1.msra.mxu0 0.0
        %1464 = vmatprep.subr.mxu0 0.0
        %1465 = vmatpush1.msra.mxu0 0.0
        %1466 = vmatprep.subr.mxu0 0.0
        %1467 = vmatpush1.msra.mxu0 0.0
        %1468 = vmatprep.subr.mxu0 0.0
        %1469 = vmatpush1.msra.mxu0 0.0
        %1470 = vmatprep.subr.mxu0 0.0
        %1471 = vmatpush1.msra.mxu0 0.0
        %1472 = vmatprep.subr.mxu0 0.0
        %1473 = vmatpush1.msra.mxu0 0.0
        %1474 = vmatprep.subr.mxu0 0.0
        %1475 = vmatpush1.msra.mxu0 0.0
        %1476 = vmatprep.subr.mxu0 0.0
        %1477 = vmatpush1.msra.mxu0 0.0
        %1478 = vmatprep.subr.mxu0 0.0
        %1479 = vmatpush1.msra.mxu0 0.0
        %1480 = vmatprep.subr.mxu0 0.0
        %1481 = vmatpush1.msra.mxu0 0.0
        %1482 = vmatprep.mubr.f32.mxu0 0.0
        %1483 = vmatmul.mubr.f32.gmra.mrb[0].mxu0 %v1416
        %v1484 = vpop.f32.mrb[0].mxu0
        %v1485 = vadd.f32 0.0, %v1484
        %v1486 = vpop.f32.mrb[0].mxu0
        %v1487 = vadd.f32 0.0, %v1486
        %1488 = vdwg.mxu0
        %v1489 = vadd.f32 %v1403, %v1485
        %v1490 = vadd.f32 %v1404, %v1487
        %v1491 = vmul.f32 %v1150, %v655
        %v1492 = vmul.f32 %v1151, %v659
        %s1493 = scalar_lea.vmem %s3, 32
        %v1494 = vld [vmem:[%s1493] sm:$0xff]
        %v1496 = vsel %vm300, %v1494, 0
        %1498 = vmatprep.subr.mxu0 %v1492
        %1499 = vmatpush1.msra.mxu0 %v1491
        %1500 = vmatprep.subr.mxu0 0.0
        %1501 = vmatpush1.msra.mxu0 0.0
        %1502 = vmatprep.subr.mxu0 0.0
        %1503 = vmatpush1.msra.mxu0 0.0
        %1504 = vmatprep.subr.mxu0 0.0
        %1505 = vmatpush1.msra.mxu0 0.0
        %1506 = vmatprep.subr.mxu0 0.0
        %1507 = vmatpush1.msra.mxu0 0.0
        %1508 = vmatprep.subr.mxu0 0.0
        %1509 = vmatpush1.msra.mxu0 0.0
        %1510 = vmatprep.subr.mxu0 0.0
        %1511 = vmatpush1.msra.mxu0 0.0
        %1512 = vmatprep.subr.mxu0 0.0
        %1513 = vmatpush1.msra.mxu0 0.0
        %1514 = vmatprep.subr.mxu0 0.0
        %1515 = vmatpush1.msra.mxu0 0.0
        %1516 = vmatprep.subr.mxu0 0.0
        %1517 = vmatpush1.msra.mxu0 0.0
        %1518 = vmatprep.subr.mxu0 0.0
        %1519 = vmatpush1.msra.mxu0 0.0
        %1520 = vmatprep.subr.mxu0 0.0
        %1521 = vmatpush1.msra.mxu0 0.0
        %1522 = vmatprep.subr.mxu0 0.0
        %1523 = vmatpush1.msra.mxu0 0.0
        %1524 = vmatprep.subr.mxu0 0.0
        %1525 = vmatpush1.msra.mxu0 0.0
        %1526 = vmatprep.subr.mxu0 0.0
        %1527 = vmatpush1.msra.mxu0 0.0
        %1528 = vmatprep.subr.mxu0 0.0
        %1529 = vmatpush1.msra.mxu0 0.0
        %1530 = vmatprep.subr.mxu0 0.0
        %1531 = vmatpush1.msra.mxu0 0.0
        %1532 = vmatprep.subr.mxu0 0.0
        %1533 = vmatpush1.msra.mxu0 0.0
        %1534 = vmatprep.subr.mxu0 0.0
        %1535 = vmatpush1.msra.mxu0 0.0
        %1536 = vmatprep.subr.mxu0 0.0
        %1537 = vmatpush1.msra.mxu0 0.0
        %1538 = vmatprep.subr.mxu0 0.0
        %1539 = vmatpush1.msra.mxu0 0.0
        %1540 = vmatprep.subr.mxu0 0.0
        %1541 = vmatpush1.msra.mxu0 0.0
        %1542 = vmatprep.subr.mxu0 0.0
        %1543 = vmatpush1.msra.mxu0 0.0
        %1544 = vmatprep.subr.mxu0 0.0
        %1545 = vmatpush1.msra.mxu0 0.0
        %1546 = vmatprep.subr.mxu0 0.0
        %1547 = vmatpush1.msra.mxu0 0.0
        %1548 = vmatprep.subr.mxu0 0.0
        %1549 = vmatpush1.msra.mxu0 0.0
        %1550 = vmatprep.subr.mxu0 0.0
        %1551 = vmatpush1.msra.mxu0 0.0
        %1552 = vmatprep.subr.mxu0 0.0
        %1553 = vmatpush1.msra.mxu0 0.0
        %1554 = vmatprep.subr.mxu0 0.0
        %1555 = vmatpush1.msra.mxu0 0.0
        %1556 = vmatprep.subr.mxu0 0.0
        %1557 = vmatpush1.msra.mxu0 0.0
        %1558 = vmatprep.subr.mxu0 0.0
        %1559 = vmatpush1.msra.mxu0 0.0
        %1560 = vmatprep.subr.mxu0 0.0
        %1561 = vmatpush1.msra.mxu0 0.0
        %1562 = vmatprep.mubr.f32.mxu0 0.0
        %1563 = vmatmul.mubr.f32.gmra.mrb[0].mxu0 %v1496
        %v1564 = vpop.f32.mrb[0].mxu0
        %v1565 = vadd.f32 0.0, %v1564
        %v1566 = vpop.f32.mrb[0].mxu0
        %v1567 = vadd.f32 0.0, %v1566
        %1568 = vdwg.mxu0
        %v1569 = vadd.f32 %v1489, %v1565
        %v1570 = vadd.f32 %v1490, %v1567
        %1571 = vrot.lane.b32.xlu0 %v1150, 127
        %v1572 = vpop.permute.xlu0 %1571
        %1573 = vrot.lane.b32.xlu0 %v1151, 127
        %v1574 = vpop.permute.xlu0 %1573
        %v1575 = vsel %vm746, %v1572, %v1574
        %v1576 = vsel %vm746, %v1574, %v1572
        %v1577 = vmul.f32 %v1575, %v755
        %v1578 = vmul.f32 %v1576, %v759
        %s1579 = scalar_lea.vmem %s3, 40
        %v1580 = vld [vmem:[%s1579] sm:$0xff]
        %v1582 = vsel %vm300, %v1580, 0
        %1584 = vmatprep.subr.mxu0 %v1578
        %1585 = vmatpush1.msra.mxu0 %v1577
        %1586 = vmatprep.subr.mxu0 0.0
        %1587 = vmatpush1.msra.mxu0 0.0
        %1588 = vmatprep.subr.mxu0 0.0
        %1589 = vmatpush1.msra.mxu0 0.0
        %1590 = vmatprep.subr.mxu0 0.0
        %1591 = vmatpush1.msra.mxu0 0.0
        %1592 = vmatprep.subr.mxu0 0.0
        %1593 = vmatpush1.msra.mxu0 0.0
        %1594 = vmatprep.subr.mxu0 0.0
        %1595 = vmatpush1.msra.mxu0 0.0
        %1596 = vmatprep.subr.mxu0 0.0
        %1597 = vmatpush1.msra.mxu0 0.0
        %1598 = vmatprep.subr.mxu0 0.0
        %1599 = vmatpush1.msra.mxu0 0.0
        %1600 = vmatprep.subr.mxu0 0.0
        %1601 = vmatpush1.msra.mxu0 0.0
        %1602 = vmatprep.subr.mxu0 0.0
        %1603 = vmatpush1.msra.mxu0 0.0
        %1604 = vmatprep.subr.mxu0 0.0
        %1605 = vmatpush1.msra.mxu0 0.0
        %1606 = vmatprep.subr.mxu0 0.0
        %1607 = vmatpush1.msra.mxu0 0.0
        %1608 = vmatprep.subr.mxu0 0.0
        %1609 = vmatpush1.msra.mxu0 0.0
        %1610 = vmatprep.subr.mxu0 0.0
        %1611 = vmatpush1.msra.mxu0 0.0
        %1612 = vmatprep.subr.mxu0 0.0
        %1613 = vmatpush1.msra.mxu0 0.0
        %1614 = vmatprep.subr.mxu0 0.0
        %1615 = vmatpush1.msra.mxu0 0.0
        %1616 = vmatprep.subr.mxu0 0.0
        %1617 = vmatpush1.msra.mxu0 0.0
        %1618 = vmatprep.subr.mxu0 0.0
        %1619 = vmatpush1.msra.mxu0 0.0
        %1620 = vmatprep.subr.mxu0 0.0
        %1621 = vmatpush1.msra.mxu0 0.0
        %1622 = vmatprep.subr.mxu0 0.0
        %1623 = vmatpush1.msra.mxu0 0.0
        %1624 = vmatprep.subr.mxu0 0.0
        %1625 = vmatpush1.msra.mxu0 0.0
        %1626 = vmatprep.subr.mxu0 0.0
        %1627 = vmatpush1.msra.mxu0 0.0
        %1628 = vmatprep.subr.mxu0 0.0
        %1629 = vmatpush1.msra.mxu0 0.0
        %1630 = vmatprep.subr.mxu0 0.0
        %1631 = vmatpush1.msra.mxu0 0.0
        %1632 = vmatprep.subr.mxu0 0.0
        %1633 = vmatpush1.msra.mxu0 0.0
        %1634 = vmatprep.subr.mxu0 0.0
        %1635 = vmatpush1.msra.mxu0 0.0
        %1636 = vmatprep.subr.mxu0 0.0
        %1637 = vmatpush1.msra.mxu0 0.0
        %1638 = vmatprep.subr.mxu0 0.0
        %1639 = vmatpush1.msra.mxu0 0.0
        %1640 = vmatprep.subr.mxu0 0.0
        %1641 = vmatpush1.msra.mxu0 0.0
        %1642 = vmatprep.subr.mxu0 0.0
        %1643 = vmatpush1.msra.mxu0 0.0
        %1644 = vmatprep.subr.mxu0 0.0
        %1645 = vmatpush1.msra.mxu0 0.0
        %1646 = vmatprep.subr.mxu0 0.0
        %1647 = vmatpush1.msra.mxu0 0.0
        %1648 = vmatprep.mubr.f32.mxu0 0.0
        %1649 = vmatmul.mubr.f32.gmra.mrb[0].mxu0 %v1582
        %v1650 = vpop.f32.mrb[0].mxu0
        %v1651 = vadd.f32 0.0, %v1650
        %v1652 = vpop.f32.mrb[0].mxu0
        %v1653 = vadd.f32 0.0, %v1652
        %1654 = vdwg.mxu0
        %v1655 = vadd.f32 %v1569, %v1651
        %v1656 = vadd.f32 %v1570, %v1653
        %1657 = vrot.lane.b32.xlu0 %v1150, 113
        %v1658 = vpop.permute.xlu0 %1657
        %1659 = vrot.lane.b32.xlu0 %v1151, 113
        %v1660 = vpop.permute.xlu0 %1659
        %v1661 = vsel %vm846, %v1658, %v1660
        %v1662 = vsel %vm846, %v1660, %v1658
        %v1663 = vmul.f32 %v1661, %v855
        %v1664 = vmul.f32 %v1662, %v859
        %s1665 = scalar_lea.vmem %s3, 48
        %v1666 = vld [vmem:[%s1665] sm:$0xff]
        %v1668 = vsel %vm300, %v1666, 0
        %1670 = vmatprep.subr.mxu0 %v1664
        %1671 = vmatpush1.msra.mxu0 %v1663
        %1672 = vmatprep.subr.mxu0 0.0
        %1673 = vmatpush1.msra.mxu0 0.0
        %1674 = vmatprep.subr.mxu0 0.0
        %1675 = vmatpush1.msra.mxu0 0.0
        %1676 = vmatprep.subr.mxu0 0.0
        %1677 = vmatpush1.msra.mxu0 0.0
        %1678 = vmatprep.subr.mxu0 0.0
        %1679 = vmatpush1.msra.mxu0 0.0
        %1680 = vmatprep.subr.mxu0 0.0
        %1681 = vmatpush1.msra.mxu0 0.0
        %1682 = vmatprep.subr.mxu0 0.0
        %1683 = vmatpush1.msra.mxu0 0.0
        %1684 = vmatprep.subr.mxu0 0.0
        %1685 = vmatpush1.msra.mxu0 0.0
        %1686 = vmatprep.subr.mxu0 0.0
        %1687 = vmatpush1.msra.mxu0 0.0
        %1688 = vmatprep.subr.mxu0 0.0
        %1689 = vmatpush1.msra.mxu0 0.0
        %1690 = vmatprep.subr.mxu0 0.0
        %1691 = vmatpush1.msra.mxu0 0.0
        %1692 = vmatprep.subr.mxu0 0.0
        %1693 = vmatpush1.msra.mxu0 0.0
        %1694 = vmatprep.subr.mxu0 0.0
        %1695 = vmatpush1.msra.mxu0 0.0
        %1696 = vmatprep.subr.mxu0 0.0
        %1697 = vmatpush1.msra.mxu0 0.0
        %1698 = vmatprep.subr.mxu0 0.0
        %1699 = vmatpush1.msra.mxu0 0.0
        %1700 = vmatprep.subr.mxu0 0.0
        %1701 = vmatpush1.msra.mxu0 0.0
        %1702 = vmatprep.subr.mxu0 0.0
        %1703 = vmatpush1.msra.mxu0 0.0
        %1704 = vmatprep.subr.mxu0 0.0
        %1705 = vmatpush1.msra.mxu0 0.0
        %1706 = vmatprep.subr.mxu0 0.0
        %1707 = vmatpush1.msra.mxu0 0.0
        %1708 = vmatprep.subr.mxu0 0.0
        %1709 = vmatpush1.msra.mxu0 0.0
        %1710 = vmatprep.subr.mxu0 0.0
        %1711 = vmatpush1.msra.mxu0 0.0
        %1712 = vmatprep.subr.mxu0 0.0
        %1713 = vmatpush1.msra.mxu0 0.0
        %1714 = vmatprep.subr.mxu0 0.0
        %1715 = vmatpush1.msra.mxu0 0.0
        %1716 = vmatprep.subr.mxu0 0.0
        %1717 = vmatpush1.msra.mxu0 0.0
        %1718 = vmatprep.subr.mxu0 0.0
        %1719 = vmatpush1.msra.mxu0 0.0
        %1720 = vmatprep.subr.mxu0 0.0
        %1721 = vmatpush1.msra.mxu0 0.0
        %1722 = vmatprep.subr.mxu0 0.0
        %1723 = vmatpush1.msra.mxu0 0.0
        %1724 = vmatprep.subr.mxu0 0.0
        %1725 = vmatpush1.msra.mxu0 0.0
        %1726 = vmatprep.subr.mxu0 0.0
        %1727 = vmatpush1.msra.mxu0 0.0
        %1728 = vmatprep.subr.mxu0 0.0
        %1729 = vmatpush1.msra.mxu0 0.0
        %1730 = vmatprep.subr.mxu0 0.0
        %1731 = vmatpush1.msra.mxu0 0.0
        %1732 = vmatprep.subr.mxu0 0.0
        %1733 = vmatpush1.msra.mxu0 0.0
        %1734 = vmatprep.mubr.f32.mxu0 0.0
        %1735 = vmatmul.mubr.f32.gmra.mrb[0].mxu0 %v1668
        %v1736 = vpop.f32.mrb[0].mxu0
        %v1737 = vadd.f32 0.0, %v1736
        %v1738 = vpop.f32.mrb[0].mxu0
        %v1739 = vadd.f32 0.0, %v1738
        %1740 = vdwg.mxu0
        %v1741 = vadd.f32 %v1655, %v1737
        %v1742 = vadd.f32 %v1656, %v1739
        %1743 = vrot.lane.b32.xlu0 %v1150, 112
        %v1744 = vpop.permute.xlu0 %1743
        %1745 = vrot.lane.b32.xlu0 %v1151, 112
        %v1746 = vpop.permute.xlu0 %1745
        %v1747 = vsel %vm946, %v1744, %v1746
        %v1748 = vsel %vm946, %v1746, %v1744
        %v1749 = vmul.f32 %v1747, %v955
        %v1750 = vmul.f32 %v1748, %v959
        %s1751 = scalar_lea.vmem %s3, 56
        %v1752 = vld [vmem:[%s1751] sm:$0xff]
        %v1754 = vsel %vm300, %v1752, 0
        %1756 = vmatprep.subr.mxu0 %v1750
        %1757 = vmatpush1.msra.mxu0 %v1749
        %1758 = vmatprep.subr.mxu0 0.0
        %1759 = vmatpush1.msra.mxu0 0.0
        %1760 = vmatprep.subr.mxu0 0.0
        %1761 = vmatpush1.msra.mxu0 0.0
        %1762 = vmatprep.subr.mxu0 0.0
        %1763 = vmatpush1.msra.mxu0 0.0
        %1764 = vmatprep.subr.mxu0 0.0
        %1765 = vmatpush1.msra.mxu0 0.0
        %1766 = vmatprep.subr.mxu0 0.0
        %1767 = vmatpush1.msra.mxu0 0.0
        %1768 = vmatprep.subr.mxu0 0.0
        %1769 = vmatpush1.msra.mxu0 0.0
        %1770 = vmatprep.subr.mxu0 0.0
        %1771 = vmatpush1.msra.mxu0 0.0
        %1772 = vmatprep.subr.mxu0 0.0
        %1773 = vmatpush1.msra.mxu0 0.0
        %1774 = vmatprep.subr.mxu0 0.0
        %1775 = vmatpush1.msra.mxu0 0.0
        %1776 = vmatprep.subr.mxu0 0.0
        %1777 = vmatpush1.msra.mxu0 0.0
        %1778 = vmatprep.subr.mxu0 0.0
        %1779 = vmatpush1.msra.mxu0 0.0
        %1780 = vmatprep.subr.mxu0 0.0
        %1781 = vmatpush1.msra.mxu0 0.0
        %1782 = vmatprep.subr.mxu0 0.0
        %1783 = vmatpush1.msra.mxu0 0.0
        %1784 = vmatprep.subr.mxu0 0.0
        %1785 = vmatpush1.msra.mxu0 0.0
        %1786 = vmatprep.subr.mxu0 0.0
        %1787 = vmatpush1.msra.mxu0 0.0
        %1788 = vmatprep.subr.mxu0 0.0
        %1789 = vmatpush1.msra.mxu0 0.0
        %1790 = vmatprep.subr.mxu0 0.0
        %1791 = vmatpush1.msra.mxu0 0.0
        %1792 = vmatprep.subr.mxu0 0.0
        %1793 = vmatpush1.msra.mxu0 0.0
        %1794 = vmatprep.subr.mxu0 0.0
        %1795 = vmatpush1.msra.mxu0 0.0
        %1796 = vmatprep.subr.mxu0 0.0
        %1797 = vmatpush1.msra.mxu0 0.0
        %1798 = vmatprep.subr.mxu0 0.0
        %1799 = vmatpush1.msra.mxu0 0.0
        %1800 = vmatprep.subr.mxu0 0.0
        %1801 = vmatpush1.msra.mxu0 0.0
        %1802 = vmatprep.subr.mxu0 0.0
        %1803 = vmatpush1.msra.mxu0 0.0
        %1804 = vmatprep.subr.mxu0 0.0
        %1805 = vmatpush1.msra.mxu0 0.0
        %1806 = vmatprep.subr.mxu0 0.0
        %1807 = vmatpush1.msra.mxu0 0.0
        %1808 = vmatprep.subr.mxu0 0.0
        %1809 = vmatpush1.msra.mxu0 0.0
        %1810 = vmatprep.subr.mxu0 0.0
        %1811 = vmatpush1.msra.mxu0 0.0
        %1812 = vmatprep.subr.mxu0 0.0
        %1813 = vmatpush1.msra.mxu0 0.0
        %1814 = vmatprep.subr.mxu0 0.0
        %1815 = vmatpush1.msra.mxu0 0.0
        %1816 = vmatprep.subr.mxu0 0.0
        %1817 = vmatpush1.msra.mxu0 0.0
        %1818 = vmatprep.subr.mxu0 0.0
        %1819 = vmatpush1.msra.mxu0 0.0
        %1820 = vmatprep.mubr.f32.mxu0 0.0
        %1821 = vmatmul.mubr.f32.gmra.mrb[0].mxu0 %v1754
        %v1822 = vpop.f32.mrb[0].mxu0
        %v1823 = vadd.f32 0.0, %v1822
        %v1824 = vpop.f32.mrb[0].mxu0
        %v1825 = vadd.f32 0.0, %v1824
        %1826 = vdwg.mxu0
        %v1827 = vadd.f32 %v1741, %v1823
        %v1828 = vadd.f32 %v1742, %v1825
        %1829 = vrot.lane.b32.xlu0 %v1150, 111
        %v1830 = vpop.permute.xlu0 %1829
        %1831 = vrot.lane.b32.xlu0 %v1151, 111
        %v1832 = vpop.permute.xlu0 %1831
        %v1833 = vsel %vm1046, %v1830, %v1832
        %v1834 = vsel %vm1046, %v1832, %v1830
        %v1835 = vmul.f32 %v1833, %v1055
        %v1836 = vmul.f32 %v1834, %v1059
        %s1837 = scalar_lea.vmem %s3, 64
        %v1838 = vld [vmem:[%s1837] sm:$0xff]
        %v1840 = vsel %vm300, %v1838, 0
        %1842 = vmatprep.subr.mxu0 %v1836
        %1843 = vmatpush1.msra.mxu0 %v1835
        %1844 = vmatprep.subr.mxu0 0.0
        %1845 = vmatpush1.msra.mxu0 0.0
        %1846 = vmatprep.subr.mxu0 0.0
        %1847 = vmatpush1.msra.mxu0 0.0
        %1848 = vmatprep.subr.mxu0 0.0
        %1849 = vmatpush1.msra.mxu0 0.0
        %1850 = vmatprep.subr.mxu0 0.0
        %1851 = vmatpush1.msra.mxu0 0.0
        %1852 = vmatprep.subr.mxu0 0.0
        %1853 = vmatpush1.msra.mxu0 0.0
        %1854 = vmatprep.subr.mxu0 0.0
        %1855 = vmatpush1.msra.mxu0 0.0
        %1856 = vmatprep.subr.mxu0 0.0
        %1857 = vmatpush1.msra.mxu0 0.0
        %1858 = vmatprep.subr.mxu0 0.0
        %1859 = vmatpush1.msra.mxu0 0.0
        %1860 = vmatprep.subr.mxu0 0.0
        %1861 = vmatpush1.msra.mxu0 0.0
        %1862 = vmatprep.subr.mxu0 0.0
        %1863 = vmatpush1.msra.mxu0 0.0
        %1864 = vmatprep.subr.mxu0 0.0
        %1865 = vmatpush1.msra.mxu0 0.0
        %1866 = vmatprep.subr.mxu0 0.0
        %1867 = vmatpush1.msra.mxu0 0.0
        %1868 = vmatprep.subr.mxu0 0.0
        %1869 = vmatpush1.msra.mxu0 0.0
        %1870 = vmatprep.subr.mxu0 0.0
        %1871 = vmatpush1.msra.mxu0 0.0
        %1872 = vmatprep.subr.mxu0 0.0
        %1873 = vmatpush1.msra.mxu0 0.0
        %1874 = vmatprep.subr.mxu0 0.0
        %1875 = vmatpush1.msra.mxu0 0.0
        %1876 = vmatprep.subr.mxu0 0.0
        %1877 = vmatpush1.msra.mxu0 0.0
        %1878 = vmatprep.subr.mxu0 0.0
        %1879 = vmatpush1.msra.mxu0 0.0
        %1880 = vmatprep.subr.mxu0 0.0
        %1881 = vmatpush1.msra.mxu0 0.0
        %1882 = vmatprep.subr.mxu0 0.0
        %1883 = vmatpush1.msra.mxu0 0.0
        %1884 = vmatprep.subr.mxu0 0.0
        %1885 = vmatpush1.msra.mxu0 0.0
        %1886 = vmatprep.subr.mxu0 0.0
        %1887 = vmatpush1.msra.mxu0 0.0
        %1888 = vmatprep.subr.mxu0 0.0
        %1889 = vmatpush1.msra.mxu0 0.0
        %1890 = vmatprep.subr.mxu0 0.0
        %1891 = vmatpush1.msra.mxu0 0.0
        %1892 = vmatprep.subr.mxu0 0.0
        %1893 = vmatpush1.msra.mxu0 0.0
        %1894 = vmatprep.subr.mxu0 0.0
        %1895 = vmatpush1.msra.mxu0 0.0
        %1896 = vmatprep.subr.mxu0 0.0
        %1897 = vmatpush1.msra.mxu0 0.0
        %1898 = vmatprep.subr.mxu0 0.0
        %1899 = vmatpush1.msra.mxu0 0.0
        %1900 = vmatprep.subr.mxu0 0.0
        %1901 = vmatpush1.msra.mxu0 0.0
        %1902 = vmatprep.subr.mxu0 0.0
        %1903 = vmatpush1.msra.mxu0 0.0
        %1904 = vmatprep.subr.mxu0 0.0
        %1905 = vmatpush1.msra.mxu0 0.0
        %1906 = vmatprep.mubr.f32.mxu0 0.0
        %1907 = vmatmul.mubr.f32.gmra.mrb[0].mxu0 %v1840
        %v1908 = vpop.f32.mrb[0].mxu0
        %v1909 = vadd.f32 0.0, %v1908
        %v1910 = vpop.f32.mrb[0].mxu0
        %v1911 = vadd.f32 0.0, %v1910
        %1912 = vdwg.mxu0
        %v1913 = vadd.f32 %v1827, %v1909
        %v1914 = vadd.f32 %v1828, %v1911
        %v1915 = vld [vmem:[%s4] sm:$0xff]
        %1917 = vset.pattern.permute.xlu0 0
        %1918 = vperm.xlu0 %1917, %v1915
        %v1919 = vpop.permute.xlu0 %1918
        %v1921 = vadd.f32 %v1913, %v1919
        %v1922 = vadd.f32 %v1914, %v1919
        %v1923 = vadd.f32 %v1921, %v250
        %v1924 = vadd.f32 %v1922, %v251
        %v1925 = vmax.f32 %v1923, 0.0
        %v1926 = vmax.f32 %v1924, 0.0
        %1927 = vst [vmem:[%s244] sm:$0xff] %v1925
        %1928 = vst [vmem:[%s244 + $0x8] sm:$0xff] %v1926
        %s1929 = sand.u32 %s159, 1
        %s1930 = scalar_lea.sflag [#allocation3], %s1929
        %s1931 = sand.u32 %s159, 1
        %s1932 = smul.addr %s1931, 16
        %s1933 = scalar_lea.vmem [#allocation2], %s1932
        // Predicated region
        $region45: #{tpu_custom_call.1} parent=43 // pred_check
          %p1934 = pneg %p169
        $region46: #{tpu_custom_call.1} parent=43 // pred_check_branch
          %1936 = sbr.rel (%p1934) target = $region48
        $region47: #{tpu_custom_call.1} parent=43 // pred_region
          %s1938 = ssub.s32 256, 256
          %1939 = vsyncadd %s1930, %s1938
          %s1940 = smul.addr %s20, 2
          %s1941 = smul.addr %s1940, 128
          %s1942 = scalar_lea.hbm %s6, %s1941
          %s1944 = sshll.u32 %s1933, 4
          %s1945 = int_to_ptr.vmem [resolvable:$true] %s1944
          %1947 = dma.vmem_to_hbm [thread:$0]  %s1945, 256, %s1942, %s1930
        $region48: #{tpu_custom_call.1} parent=43 // pred_fallthru
          _
      $region44: #{tpu_custom_call.1} parent=5 // pred_fallthru
        _
      %p1948 = scmp.le.s32.totalorder 2, %s15
      // Predicated region
      $region49: #{tpu_custom_call.1} parent=5 // pred_check
        %p1949 = pneg %p1948
      $region50: #{tpu_custom_call.1} parent=5 // pred_check_branch
        %1951 = sbr.rel (%p1949) target = $region52
      $region51: #{tpu_custom_call.1} parent=5 // pred_region
        %s1952 = ssub.s32 %s15, 2
        // Predicated region
        $region53: #{tpu_custom_call.1} parent=51 // pred_check
          %p1953 = pneg %p175
        $region54: #{tpu_custom_call.1} parent=51 // pred_check_branch
          %1955 = sbr.rel (%p1953) target = $region56
        $region55: #{tpu_custom_call.1} parent=51 // pred_region
          %s1956 = sand.u32 %s160, 1
          %s1957 = scalar_lea.sflag [#allocation3], %s1956
          %s1958 = sand.u32 %s160, 1
          %s1959 = smul.addr %s1958, 16
          %s1960 = scalar_lea.vmem [#allocation2], %s1959
          %1961 = dma.done %s1957, 256
        $region56: #{tpu_custom_call.1} parent=51 // pred_fallthru
          _
      $region52: #{tpu_custom_call.1} parent=5 // pred_fallthru
        _
    $region6: #{tpu_custom_call.1} parent=1 // loop_footer
      %s19 = sadd.s32 1, %s15
    $region7: #{tpu_custom_call.1} parent=1 // loop_footer_branch
      %14 = sbr.rel target = $region3
    $region8: #{tpu_custom_call.1} parent=1 // loop_exit
      _
    %1962 = vsyncpa [#allocation3], 1
    %s1963 = scalar_lea.sflag [#allocation3], 1
    %1964 = vsyncpa %s1963, 1

</llo_original>
